<compile_context>
chip_gen: v7x
topology: tpu7x:2x2x1
jax: 0.10.0
libtpu: 0.0.40
codegen_flags: <defaults>
</compile_context>

<pallas_src>
import itertools
import functools

import numpy as np
import jax
import jax.numpy as jnp
from jax.experimental import pallas as pl
from jax.experimental.pallas import tpu as pltpu


# ---------------------------------------------------------------------------
# Static combinatorics (mirrors CoLa.getcombos / MassAsymmetry.getcombos)
# ---------------------------------------------------------------------------
def cola_combos_fn(n, k):
    return sorted([list(c) for c in itertools.combinations(range(n), k)])


def masym_combos_fn(cola_combos):
    sets = [set(c) for c in cola_combos]
    combos = []
    for idx, i in enumerate(sets):
        for jdx, j in enumerate(sets):
            if not i.intersection(j):
                if [idx, jdx] not in combos and [jdx, idx] not in combos:
                    combos.append([idx, jdx])
    return sorted(combos)


def _round_up(v, m):
    return (v + m - 1) // m * m


# ---------------------------------------------------------------------------
# Pallas kernel (operates on a (4*D, TN) batch tile, batch on lanes)
# ---------------------------------------------------------------------------
def head_kernel(x_ref, bcsel_ref, pairsel_ref, labs_ref, out_ref, *,
                ncola_pad, npairs, npairs_pad, nchildren):
    x = x_ref[...]                 # (4*D, TN)   component-major, batch on lanes
    bcsel = bcsel_ref[...]         # (4*ncola_pad, 4*D)  block-diag CoLa selector
    pairsel = pairsel_ref[...]     # (2*npairs_pad, ncola_pad)  one-hot pair selector
    labs_t = labs_ref[...]         # (2*nchildren, npairs_pad)

    P = ncola_pad
    Pp = npairs_pad

    # --- CoLa: all 4 four-vector components summed in ONE MXU matmul ---------
    y = jnp.dot(bcsel, x, preferred_element_type=jnp.float32)   # (4*P, TN)
    e, px = y[0:P], y[P:2 * P]
    py, pz = y[2 * P:3 * P], y[3 * P:4 * P]

    # --- LoLa: Minkowski invariant mass -------------------------------------
    m2 = e * e - px * px - py * py - pz * pz
    m = jnp.sqrt(m2)                                             # (P, TN), may be NaN

    # --- pair gather via one-hot matmuls (NaN-safe: 0*NaN would poison a dot)
    mnan = jnp.isnan(m)
    m_clean = jnp.where(mnan, 0.0, m)
    pm = jnp.dot(pairsel, m_clean, preferred_element_type=jnp.float32)          # (2*Pp, TN)
    pn = jnp.dot(pairsel, mnan.astype(jnp.float32), preferred_element_type=jnp.float32)
    mi, mj = pm[0:Pp], pm[Pp:2 * Pp]
    nan_i, nan_j = pn[0:Pp] > 0.5, pn[Pp:2 * Pp] > 0.5

    # --- MassAsymmetry: |mi - mj| / (mi + mj), divide on the EUP -------------
    denom = mi + mj
    asym = jnp.abs(mi - mj) * pl.reciprocal(denom, approx=True)  # (Pp, TN)

    rowid = jax.lax.broadcasted_iota(jnp.int32, asym.shape, 0)   # pair index per row
    valid = rowid < npairs
    isn = nan_i | nan_j | (denom == 0.0) | jnp.isnan(asym) | ~valid
    all_nan = jnp.all(isn, axis=0, keepdims=True)                # (1, TN)

    fwd = jnp.where(isn, jnp.inf, asym)
    # TODO(synk): PyTorch puts a 1 at a torch.randint column for all-NaN rows;
    # here we deterministically use column 0 (semantically equivalent fallback).
    fwd = jnp.where(all_nan & (rowid == 0), jnp.float32(1.0), fwd)

    # --- SelectionLayer: argmin over the pair axis (first occurrence) --------
    minv = jnp.min(fwd, axis=0, keepdims=True)
    s = jnp.min(jnp.where(fwd == minv, rowid, Pp), axis=0, keepdims=True)  # (1, TN)

    # --- gathers via one-hot of the selected pair ----------------------------
    onehot_b = rowid == s                                        # (Pp, TN) bool
    onehot_f = onehot_b.astype(jnp.float32)

    labs_o = jnp.dot(labs_t, onehot_f, preferred_element_type=jnp.float32)  # (2k, TN)
    mi_g = jnp.where(nan_i, jnp.float32(jnp.nan), mi)            # restore NaN gather
    mj_g = jnp.where(nan_j, jnp.float32(jnp.nan), mj)
    ms0 = jnp.sum(jnp.where(onehot_b, mi_g, 0.0), axis=0, keepdims=True)    # (1, TN)
    ms1 = jnp.sum(jnp.where(onehot_b, mj_g, 0.0), axis=0, keepdims=True)
    asel = jnp.sum(jnp.where(onehot_b, fwd, 0.0), axis=0, keepdims=True)

    out_ref[...] = jnp.concatenate([labs_o, ms0, ms1, asel], axis=0)  # (2k+3, TN)


# ---------------------------------------------------------------------------
# Wrapper
# ---------------------------------------------------------------------------
def mass_asymmetry_head(x, in_dim, nchildren, *, tile_n=512):
    N = x.shape[0]
    assert x.shape == (N, in_dim, 4)
    D = in_dim

    cola = cola_combos_fn(in_dim, nchildren)          # (ncola, nchildren)
    ncola = len(cola)
    pairs = masym_combos_fn(cola)                      # (npairs, 2)
    npairs = len(pairs)

    ncola_pad = _round_up(ncola, 8)
    npairs_pad = _round_up(npairs, 8)
    out_width = 2 * nchildren + 3

    # Block-diagonal CoLa selection matrix: one matmul covers all 4 components.
    bcsel = np.zeros((4 * ncola_pad, 4 * D), np.float32)
    for k in range(4):
        for c, combo in enumerate(cola):
            for p in combo:
                bcsel[k * ncola_pad + c, k * D + p] = 1.0

    # One-hot pair selector: rows [0,npairs) pick combo i, rows [Pp, Pp+npairs) pick combo j.
    pairsel = np.zeros((2 * npairs_pad, ncola_pad), np.float32)
    for p, (a, b) in enumerate(pairs):
        pairsel[p, a] = 1.0
        pairsel[npairs_pad + p, b] = 1.0

    # Labels table (transposed): column p holds flattened particle ids of pair p.
    labs_t = np.zeros((2 * nchildren, npairs_pad), np.float32)
    for p, (a, b) in enumerate(pairs):
        labs_t[:, p] = np.array(cola[a] + cola[b], np.float32)

    # Batch tile: multiple of 128 lanes; 512 rows amortizes per-step overhead.
    # Blocks are tiny (tens of KB), so default scoped VMEM is fine on v5e/v6e/v7x.
    tile_n = _round_up(max(128, min(tile_n, _round_up(N, 128))), 128)
    n_pad = _round_up(N, tile_n)

    # Component-major, batch-on-lanes layout (lane-dense input); pad the batch.
    x_t = jnp.transpose(x, (2, 1, 0)).reshape(4 * D, N)
    x_t = jnp.pad(x_t, ((0, 0), (0, n_pad - N)))

    kernel = functools.partial(head_kernel, ncola_pad=ncola_pad, npairs=npairs,
                               npairs_pad=npairs_pad, nchildren=nchildren)

    out_t = pl.pallas_call(
        kernel,
        out_shape=jax.ShapeDtypeStruct((out_width, n_pad), jnp.float32),
        grid=(n_pad // tile_n,),
        in_specs=[
            pl.BlockSpec((4 * D, tile_n), lambda i: (0, i)),
            pl.BlockSpec((4 * ncola_pad, 4 * D), lambda i: (0, 0)),
            pl.BlockSpec((2 * npairs_pad, ncola_pad), lambda i: (0, 0)),
            pl.BlockSpec((2 * nchildren, npairs_pad), lambda i: (0, 0)),
        ],
        out_specs=pl.BlockSpec((out_width, tile_n), lambda i: (0, i)),
        compiler_params=pltpu.CompilerParams(
            dimension_semantics=("parallel",)),
    )(x_t, jnp.asarray(bcsel), jnp.asarray(pairsel), jnp.asarray(labs_t))

    return out_t[:, :N].T                              # (N, out_width)


# ---------------------------------------------------------------------------
# Pure-numpy reference (NaN-free inputs) for a sanity check
# ---------------------------------------------------------------------------
def ref_forward(x_np, in_dim, nchildren):
    cola = cola_combos_fn(in_dim, nchildren)
    pairs = np.array(masym_combos_fn(cola), dtype=np.int64)
    cola_np = np.array(cola, dtype=np.int64)
    y = np.stack([x_np[:, c, :].sum(axis=1) for c in cola], axis=1)
    m2 = y[..., 0] ** 2 - y[..., 1] ** 2 - y[..., 2] ** 2 - y[..., 3] ** 2
    m = np.sqrt(m2)
    asym = np.abs(m[:, pairs[:, 0]] - m[:, pairs[:, 1]]) / (
        m[:, pairs[:, 0]] + m[:, pairs[:, 1]]
    )
    s = np.argmin(asym, axis=1)
    iasym = pairs[s]
    labs = cola_np[iasym].reshape(x_np.shape[0], -1).astype(np.float32)
    ms = np.take_along_axis(m, iasym, axis=1)
    a = np.take_along_axis(asym, s[:, None], axis=1)
    return np.concatenate([labs, ms, a], axis=1).astype(np.float32), asym


if __name__ == "__main__":
    N, IN_DIM, NCHILDREN = 1000, 6, 3   # ncola = C(6,3) = 20, npairs = 10

    key = jax.random.PRNGKey(0)
    k1, k2 = jax.random.split(key)
    p3 = jax.random.uniform(k1, (N, IN_DIM, 3), minval=-1.0, maxval=1.0)
    mass = jax.random.uniform(k2, (N, IN_DIM, 1), minval=0.5, maxval=1.5)
    energy = jnp.sqrt(jnp.sum(p3 * p3, axis=-1, keepdims=True) + mass * mass)
    x = jnp.concatenate([energy, p3], axis=-1).astype(jnp.float32)  # (N, inDim, 4)

    out = mass_asymmetry_head(x, IN_DIM, NCHILDREN)
    out = jax.block_until_ready(out)
    out_np = np.asarray(out)

    ref, ref_asym = ref_forward(np.asarray(x), IN_DIM, NCHILDREN)
    assert out_np.shape == ref.shape, (out_np.shape, ref.shape)
    assert np.all(np.isfinite(out_np))

    # Only compare rows whose argmin is numerically unambiguous: near-ties can
    # legitimately flip under f32 MXU sums / EUP approximate reciprocal.
    srt = np.sort(ref_asym, axis=1)
    stable = (srt[:, 1] - srt[:, 0]) > 1e-3
    assert stable.mean() > 0.9, stable.mean()
    assert np.allclose(out_np[stable], ref[stable], rtol=2e-3, atol=2e-3), (
        np.abs(out_np[stable] - ref[stable]).max()
    )

    print("KERNEL_OK")
</pallas_src>

<mosaic_0001>
module attributes {stable_mosaic.version = 11 : i64} {
  func.func @head_kernel(%arg0: i32, %arg1: memref<24x512xf32, #tpu.memory_space<vmem>>, %arg2: memref<96x24xf32, #tpu.memory_space<vmem>>, %arg3: memref<32x24xf32, #tpu.memory_space<vmem>>, %arg4: memref<6x16xf32, #tpu.memory_space<vmem>>, %arg5: memref<9x512xf32, #tpu.memory_space<vmem>>) attributes {dimension_semantics = [#tpu.dimension_semantics<parallel>], iteration_bounds = array<i64: 2>, scalar_prefetch = 0 : i64, scratch_operands = 0 : i64, tpu.core_type = #tpu.core_type<tc>, window_params = [{transform_indices = @transform_0, window_bounds = array<i64: 24, 512>}, {pipeline_mode = #tpu.pipeline_mode<synchronous>, transform_indices = @transform_1, window_bounds = array<i64: 96, 24>}, {pipeline_mode = #tpu.pipeline_mode<synchronous>, transform_indices = @transform_2, window_bounds = array<i64: 32, 24>}, {pipeline_mode = #tpu.pipeline_mode<synchronous>, transform_indices = @transform_3, window_bounds = array<i64: 6, 16>}, {transform_indices = @transform_4, window_bounds = array<i64: 9, 512>}]} {
    %c0 = arith.constant 0 : index
    %c0_0 = arith.constant 0 : index
    %0 = vector.load %arg1[%c0, %c0_0] : memref<24x512xf32, #tpu.memory_space<vmem>>, vector<24x512xf32>
    %c0_1 = arith.constant 0 : index
    %c0_2 = arith.constant 0 : index
    %1 = vector.load %arg2[%c0_1, %c0_2] : memref<96x24xf32, #tpu.memory_space<vmem>>, vector<96x24xf32>
    %c0_3 = arith.constant 0 : index
    %c0_4 = arith.constant 0 : index
    %2 = vector.load %arg3[%c0_3, %c0_4] : memref<32x24xf32, #tpu.memory_space<vmem>>, vector<32x24xf32>
    %c0_5 = arith.constant 0 : index
    %c0_6 = arith.constant 0 : index
    %3 = vector.load %arg4[%c0_5, %c0_6] : memref<6x16xf32, #tpu.memory_space<vmem>>, vector<6x16xf32>
    %cst = arith.constant dense<0.000000e+00> : vector<96x512xf32>
    %4 = tpu.matmul %1, %0, %cst {dimension_numbers = #tpu.dot_dimension_numbers<[1], [0], [0], [1], [0, 0, 1, 1], [], []>} : vector<96x24xf32>, vector<24x512xf32>, vector<96x512xf32> -> vector<96x512xf32>
    %5 = vector.extract_strided_slice %4 {offsets = [0, 0], sizes = [24, 512], strides = [1, 1]} : vector<96x512xf32> to vector<24x512xf32>
    %6 = vector.extract_strided_slice %4 {offsets = [24, 0], sizes = [24, 512], strides = [1, 1]} : vector<96x512xf32> to vector<24x512xf32>
    %7 = vector.extract_strided_slice %4 {offsets = [48, 0], sizes = [24, 512], strides = [1, 1]} : vector<96x512xf32> to vector<24x512xf32>
    %8 = vector.extract_strided_slice %4 {offsets = [72, 0], sizes = [24, 512], strides = [1, 1]} : vector<96x512xf32> to vector<24x512xf32>
    %9 = arith.mulf %5, %5 : vector<24x512xf32>
    %10 = arith.mulf %6, %6 : vector<24x512xf32>
    %11 = arith.subf %9, %10 : vector<24x512xf32>
    %12 = arith.mulf %7, %7 : vector<24x512xf32>
    %13 = arith.subf %11, %12 : vector<24x512xf32>
    %14 = arith.mulf %8, %8 : vector<24x512xf32>
    %15 = arith.subf %13, %14 : vector<24x512xf32>
    %16 = math.sqrt %15 : vector<24x512xf32>
    %17 = arith.cmpf one, %16, %16 : vector<24x512xf32>
    %cst_7 = arith.constant 0.000000e+00 : f32
    %18 = vector.broadcast %cst_7 : f32 to vector<24x512xf32>
    %19 = arith.select %17, %18, %16 : vector<24x512xi1>, vector<24x512xf32>
    %cst_8 = arith.constant dense<0.000000e+00> : vector<32x512xf32>
    %20 = tpu.matmul %2, %19, %cst_8 {dimension_numbers = #tpu.dot_dimension_numbers<[1], [0], [0], [1], [0, 0, 1, 1], [], []>} : vector<32x24xf32>, vector<24x512xf32>, vector<32x512xf32> -> vector<32x512xf32>
    %21 = arith.extui %17 : vector<24x512xi1> to vector<24x512xi32>
    %22 = arith.sitofp %21 : vector<24x512xi32> to vector<24x512xf32>
    %cst_9 = arith.constant dense<0.000000e+00> : vector<32x512xf32>
    %23 = tpu.matmul %2, %22, %cst_9 {dimension_numbers = #tpu.dot_dimension_numbers<[1], [0], [0], [1], [0, 0, 1, 1], [], []>} : vector<32x24xf32>, vector<24x512xf32>, vector<32x512xf32> -> vector<32x512xf32>
    %24 = vector.extract_strided_slice %20 {offsets = [0, 0], sizes = [16, 512], strides = [1, 1]} : vector<32x512xf32> to vector<16x512xf32>
    %25 = vector.extract_strided_slice %20 {offsets = [16, 0], sizes = [16, 512], strides = [1, 1]} : vector<32x512xf32> to vector<16x512xf32>
    %26 = vector.extract_strided_slice %23 {offsets = [0, 0], sizes = [16, 512], strides = [1, 1]} : vector<32x512xf32> to vector<16x512xf32>
    %cst_10 = arith.constant 5.000000e-01 : f32
    %27 = vector.broadcast %cst_10 : f32 to vector<16x512xf32>
    %28 = arith.cmpf ogt, %26, %27 : vector<16x512xf32>
    %29 = vector.extract_strided_slice %23 {offsets = [16, 0], sizes = [16, 512], strides = [1, 1]} : vector<32x512xf32> to vector<16x512xf32>
    %cst_11 = arith.constant 5.000000e-01 : f32
    %30 = vector.broadcast %cst_11 : f32 to vector<16x512xf32>
    %31 = arith.cmpf ogt, %29, %30 : vector<16x512xf32>
    %32 = arith.addf %24, %25 : vector<16x512xf32>
    %33 = arith.subf %24, %25 : vector<16x512xf32>
    %34 = math.absf %33 : vector<16x512xf32>
    %35 = tpu.reciprocal %32 {approx = true} : vector<16x512xf32> -> vector<16x512xf32>
    %36 = arith.mulf %34, %35 : vector<16x512xf32>
    %37 = tpu.iota {dimensions = array<i32: 0>} : vector<16x512xi32>
    %c10_i32 = arith.constant 10 : i32
    %38 = vector.broadcast %c10_i32 : i32 to vector<16x512xi32>
    %39 = arith.cmpi slt, %37, %38 : vector<16x512xi32>
    %40 = arith.ori %28, %31 : vector<16x512xi1>
    %cst_12 = arith.constant 0.000000e+00 : f32
    %41 = vector.broadcast %cst_12 : f32 to vector<16x512xf32>
    %42 = arith.cmpf oeq, %32, %41 : vector<16x512xf32>
    %43 = arith.ori %40, %42 : vector<16x512xi1>
    %44 = arith.cmpf one, %36, %36 : vector<16x512xf32>
    %45 = arith.ori %43, %44 : vector<16x512xi1>
    %cst_13 = arith.constant dense<true> : vector<16x512xi1>
    %46 = arith.xori %39, %cst_13 : vector<16x512xi1>
    %47 = arith.ori %45, %46 : vector<16x512xi1>
    %cst_14 = arith.constant 1.000000e+00 : f32
    %cst_15 = arith.constant 0.000000e+00 : f32
    %48 = vector.broadcast %cst_14 : f32 to vector<16x512xf32>
    %49 = vector.broadcast %cst_15 : f32 to vector<16x512xf32>
    %50 = arith.select %47, %48, %49 : vector<16x512xi1>, vector<16x512xf32>
    %cst_16 = arith.constant dense<0x7F800000> : vector<512xf32>
    %51 = vector.multi_reduction <minimumf>, %50, %cst_16 [0] : vector<16x512xf32> to vector<512xf32>
    %cst_17 = arith.constant 0.000000e+00 : f32
    %52 = vector.broadcast %cst_17 : f32 to vector<512xf32>
    %53 = arith.cmpf ogt, %51, %52 : vector<512xf32>
    %54 = vector.shape_cast %53 : vector<512xi1> to vector<1x512xi1>
    %cst_18 = arith.constant 0x7F800000 : f32
    %55 = vector.broadcast %cst_18 : f32 to vector<16x512xf32>
    %56 = arith.select %47, %55, %36 : vector<16x512xi1>, vector<16x512xf32>
    %c0_i32 = arith.constant 0 : i32
    %57 = vector.broadcast %c0_i32 : i32 to vector<16x512xi32>
    %58 = arith.cmpi eq, %37, %57 : vector<16x512xi32>
    %59 = vector.broadcast %54 : vector<1x512xi1> to vector<16x512xi1>
    %60 = arith.andi %59, %58 : vector<16x512xi1>
    %cst_19 = arith.constant 1.000000e+00 : f32
    %61 = vector.broadcast %cst_19 : f32 to vector<16x512xf32>
    %62 = arith.select %60, %61, %56 : vector<16x512xi1>, vector<16x512xf32>
    %cst_20 = arith.constant dense<0x7F800000> : vector<512xf32>
    %63 = vector.multi_reduction <minimumf>, %62, %cst_20 [0] : vector<16x512xf32> to vector<512xf32>
    %64 = vector.shape_cast %63 : vector<512xf32> to vector<1x512xf32>
    %65 = vector.broadcast %64 : vector<1x512xf32> to vector<16x512xf32>
    %66 = arith.cmpf oeq, %62, %65 : vector<16x512xf32>
    %c16_i32 = arith.constant 16 : i32
    %67 = vector.broadcast %c16_i32 : i32 to vector<16x512xi32>
    %68 = arith.select %66, %37, %67 : vector<16x512xi1>, vector<16x512xi32>
    %cst_21 = arith.constant dense<2147483647> : vector<512xi32>
    %69 = vector.multi_reduction <minsi>, %68, %cst_21 [0] : vector<16x512xi32> to vector<512xi32>
    %70 = vector.shape_cast %69 : vector<512xi32> to vector<1x512xi32>
    %71 = vector.broadcast %70 : vector<1x512xi32> to vector<16x512xi32>
    %72 = arith.cmpi eq, %37, %71 : vector<16x512xi32>
    %73 = arith.extui %72 : vector<16x512xi1> to vector<16x512xi32>
    %74 = arith.sitofp %73 : vector<16x512xi32> to vector<16x512xf32>
    %cst_22 = arith.constant dense<0.000000e+00> : vector<6x512xf32>
    %75 = tpu.matmul %3, %74, %cst_22 {dimension_numbers = #tpu.dot_dimension_numbers<[1], [0], [0], [1], [0, 0, 1, 1], [], []>} : vector<6x16xf32>, vector<16x512xf32>, vector<6x512xf32> -> vector<6x512xf32>
    %cst_23 = arith.constant 0x7FC00000 : f32
    %76 = vector.broadcast %cst_23 : f32 to vector<16x512xf32>
    %77 = arith.select %28, %76, %24 : vector<16x512xi1>, vector<16x512xf32>
    %cst_24 = arith.constant 0x7FC00000 : f32
    %78 = vector.broadcast %cst_24 : f32 to vector<16x512xf32>
    %79 = arith.select %31, %78, %25 : vector<16x512xi1>, vector<16x512xf32>
    %cst_25 = arith.constant 0.000000e+00 : f32
    %80 = vector.broadcast %cst_25 : f32 to vector<16x512xf32>
    %81 = arith.select %72, %77, %80 : vector<16x512xi1>, vector<16x512xf32>
    %cst_26 = arith.constant dense<0.000000e+00> : vector<512xf32>
    %82 = vector.multi_reduction <add>, %81, %cst_26 [0] : vector<16x512xf32> to vector<512xf32>
    %83 = vector.shape_cast %82 : vector<512xf32> to vector<1x512xf32>
    %cst_27 = arith.constant 0.000000e+00 : f32
    %84 = vector.broadcast %cst_27 : f32 to vector<16x512xf32>
    %85 = arith.select %72, %79, %84 : vector<16x512xi1>, vector<16x512xf32>
    %cst_28 = arith.constant dense<0.000000e+00> : vector<512xf32>
    %86 = vector.multi_reduction <add>, %85, %cst_28 [0] : vector<16x512xf32> to vector<512xf32>
    %87 = vector.shape_cast %86 : vector<512xf32> to vector<1x512xf32>
    %cst_29 = arith.constant 0.000000e+00 : f32
    %88 = vector.broadcast %cst_29 : f32 to vector<16x512xf32>
    %89 = arith.select %72, %62, %88 : vector<16x512xi1>, vector<16x512xf32>
    %cst_30 = arith.constant dense<0.000000e+00> : vector<512xf32>
    %90 = vector.multi_reduction <add>, %89, %cst_30 [0] : vector<16x512xf32> to vector<512xf32>
    %91 = vector.shape_cast %90 : vector<512xf32> to vector<1x512xf32>
    %92 = tpu.concatenate %75, %83, %87, %91 in 0 : vector<6x512xf32>, vector<1x512xf32>, vector<1x512xf32>, vector<1x512xf32> -> vector<9x512xf32>
    %c0_31 = arith.constant 0 : index
    %c0_32 = arith.constant 0 : index
    %93 = vector.load %arg5[%c0_31, %c0_32] : memref<9x512xf32, #tpu.memory_space<vmem>>, vector<9x512xf32>
    tpu.vector_store %arg5[%c0_31, %c0_32], %92 {strides = array<i32>} : memref<9x512xf32, #tpu.memory_space<vmem>>, vector<9x512xf32>,
    return
  }
  func.func @transform_0(%arg0: i32) -> (i32, i32) {
    %c0_i32 = arith.constant 0 : i32
    %c0_i32_0 = arith.constant 0 : i32
    return %c0_i32, %arg0 : i32, i32
  }
  func.func @transform_1(%arg0: i32) -> (i32, i32) {
    %c0_i32 = arith.constant 0 : i32
    %c0_i32_0 = arith.constant 0 : i32
    %c0_i32_1 = arith.constant 0 : i32
    return %c0_i32, %c0_i32_0 : i32, i32
  }
  func.func @transform_2(%arg0: i32) -> (i32, i32) {
    %c0_i32 = arith.constant 0 : i32
    %c0_i32_0 = arith.constant 0 : i32
    %c0_i32_1 = arith.constant 0 : i32
    return %c0_i32, %c0_i32_0 : i32, i32
  }
  func.func @transform_3(%arg0: i32) -> (i32, i32) {
    %c0_i32 = arith.constant 0 : i32
    %c0_i32_0 = arith.constant 0 : i32
    %c0_i32_1 = arith.constant 0 : i32
    return %c0_i32, %c0_i32_0 : i32, i32
  }
  func.func @transform_4(%arg0: i32) -> (i32, i32) {
    %c0_i32 = arith.constant 0 : i32
    %c0_i32_0 = arith.constant 0 : i32
    return %c0_i32, %arg0 : i32, i32
  }
}

</mosaic_0001>

<llo_original>
// kernel: tpu_custom_call.1
$region0: #{tpu_custom_call.1}
  #allocation0 [shape = 'u32[]', space=smem, size = 0x4, offset = 0x4, fixed_abs, tag = 'smem constant byte address 0x4 - core index']
  #allocation1 [shape = 'u32[144,128]{1,0:T(1,128)}', space=vmem, size = 0x12000, scoped, tag = 'internal scratch']
  %s0 = inlined_call_operand.hbm [shape: f32[24,1024], index: 0, kind: input, shape index: {}]
  %s1 = inlined_call_operand.vmem [shape: f32[96,24], index: 1, kind: input, shape index: {}]
  %s2 = inlined_call_operand.vmem [shape: f32[32,24], index: 2, kind: input, shape index: {}]
  %s3 = inlined_call_operand.vmem [shape: f32[6,16], index: 3, kind: input, shape index: {}]
  %s4 = inlined_call_operand.hbm [shape: f32[9,1024], index: 4, kind: output, shape index: {}]
  %s5 = sld [smem:[#allocation0]]
  $region53: #{tpu_custom_call.1} parent=0
    _
  %s7 = ssub.s32 1, %s5
  %s8 = scalar_select 0, %s7, %s5
  $region1: #{tpu_custom_call.1} parent=0
    #allocation2 [shape = 'u8[98304]{0}', space=vmem, size = 0x18000, scoped, tag = 'input window, operand 0']
    #allocation3 [shape = 's32[2]{0}', space=sflag, size = 0x8, scoped, tag = 'scoped memory for tpu_custom_call.1']
    #allocation4 [shape = 's32[2]{0}', space=sflag, size = 0x8, scoped, tag = 'scoped memory for tpu_custom_call.1']
    #allocation5 [shape = 'u8[65536]{0}', space=vmem, size = 0x10000, scoped, tag = 'output window, operand 0']
    %9 = vsyncpa [#allocation3], 0
    %s10 = scalar_lea.sflag [#allocation3], 1
    %11 = vsyncpa %s10, 0
    %12 = vsyncpa [#allocation4], 0
    %s13 = scalar_lea.sflag [#allocation4], 1
    %14 = vsyncpa %s13, 0
    loop: start=0, step=1, limit=4
    $region2: #{tpu_custom_call.1} parent=1 // loop_pre_header
      _
    $region3: #{tpu_custom_call.1} parent=1 // loop_header
      %s16 = sphi 0, %s20
      %p17 = scmp.ge.s32.totalorder %s16, 4
      %s26 = sphi 0, %s28
      %s29 = sphi 0, %s26
      %s30 = sphi 0, %s29
      %s46 = sphi 0, %s30
      %s50 = sphi 0, %s50
      %s52 = sphi 0, %s50
      %s53 = sphi 0, %s52
      %s67 = sphi 0, %s53
      %s71 = sphi 0, %s71
      %s73 = sphi 0, %s71
      %s74 = sphi 0, %s73
      %s88 = sphi 0, %s74
      %s92 = sphi 0, %s92
      %s94 = sphi 0, %s92
      %s95 = sphi 0, %s94
      %s109 = sphi 0, %s95
      %s115 = sphi 0, %s117
      %s118 = sphi 0, %s115
      %s119 = sphi 0, %s118
      %s135 = sphi 0, %s119
    $region4: #{tpu_custom_call.1} parent=1 // loop_header_branch
      %19 = sbr.rel (%p17) target = $region8
    $region5: #{tpu_custom_call.1} parent=1 // loop_body
      %s21 = ssub.s32 %s16, 1
      %s22 = ssub.s32 %s16, 2
      %s23 = sadd.s32 %s16, 1
      %s24 = ssub.s32 %s16, %s23
      %p25 = scmp.eq.s32.totalorder %s24, 0
      %s27 = sadd.s32 %s26, 1
      %s28 = scalar_select %p25, %s26, %s27
      %p31 = pneg %p25
      %p32 = scmp.eq.s32.totalorder %s16, 1
      %p33 = por %p31, %p32
      %p34 = scmp.ne.s32.totalorder %s26, %s29
      %p35 = scmp.eq.s32.totalorder %s16, 0
      %p36 = por %p34, %p35
      %p37 = scmp.ne.s32.totalorder %s26, %s29
      %p38 = scmp.eq.s32.totalorder %s21, 1
      %p39 = por %p37, %p38
      %p40 = scmp.ne.s32.totalorder %s29, %s30
      %p41 = scmp.eq.s32.totalorder %s21, 0
      %p42 = por %p40, %p41
      %p43 = scmp.ne.s32.totalorder %s29, %s30
      %p44 = scmp.eq.s32.totalorder %s22, 1
      %p45 = por %p43, %p44
      %p47 = scmp.ne.s32.totalorder %s30, %s46
      %p48 = scmp.eq.s32.totalorder %s22, 0
      %p49 = por %p47, %p48
      %s51 = sadd.s32 %s50, 1
      %p54 = scmp.eq.s32.totalorder %s16, 1
      %p55 = scmp.ne.s32.totalorder %s50, %s52
      %p56 = scmp.eq.s32.totalorder %s16, 0
      %p57 = por %p55, %p56
      %p58 = scmp.ne.s32.totalorder %s50, %s52
      %p59 = scmp.eq.s32.totalorder %s21, 1
      %p60 = por %p58, %p59
      %p61 = scmp.ne.s32.totalorder %s52, %s53
      %p62 = scmp.eq.s32.totalorder %s21, 0
      %p63 = por %p61, %p62
      %p64 = scmp.ne.s32.totalorder %s52, %s53
      %p65 = scmp.eq.s32.totalorder %s22, 1
      %p66 = por %p64, %p65
      %p68 = scmp.ne.s32.totalorder %s53, %s67
      %p69 = scmp.eq.s32.totalorder %s22, 0
      %p70 = por %p68, %p69
      %s72 = sadd.s32 %s71, 1
      %p75 = scmp.eq.s32.totalorder %s16, 1
      %p76 = scmp.ne.s32.totalorder %s71, %s73
      %p77 = scmp.eq.s32.totalorder %s16, 0
      %p78 = por %p76, %p77
      %p79 = scmp.ne.s32.totalorder %s71, %s73
      %p80 = scmp.eq.s32.totalorder %s21, 1
      %p81 = por %p79, %p80
      %p82 = scmp.ne.s32.totalorder %s73, %s74
      %p83 = scmp.eq.s32.totalorder %s21, 0
      %p84 = por %p82, %p83
      %p85 = scmp.ne.s32.totalorder %s73, %s74
      %p86 = scmp.eq.s32.totalorder %s22, 1
      %p87 = por %p85, %p86
      %p89 = scmp.ne.s32.totalorder %s74, %s88
      %p90 = scmp.eq.s32.totalorder %s22, 0
      %p91 = por %p89, %p90
      %s93 = sadd.s32 %s92, 1
      %p96 = scmp.eq.s32.totalorder %s16, 1
      %p97 = scmp.ne.s32.totalorder %s92, %s94
      %p98 = scmp.eq.s32.totalorder %s16, 0
      %p99 = por %p97, %p98
      %p100 = scmp.ne.s32.totalorder %s92, %s94
      %p101 = scmp.eq.s32.totalorder %s21, 1
      %p102 = por %p100, %p101
      %p103 = scmp.ne.s32.totalorder %s94, %s95
      %p104 = scmp.eq.s32.totalorder %s21, 0
      %p105 = por %p103, %p104
      %p106 = scmp.ne.s32.totalorder %s94, %s95
      %p107 = scmp.eq.s32.totalorder %s22, 1
      %p108 = por %p106, %p107
      %p110 = scmp.ne.s32.totalorder %s95, %s109
      %p111 = scmp.eq.s32.totalorder %s22, 0
      %p112 = por %p110, %p111
      %s113 = ssub.s32 %s16, %s23
      %p114 = scmp.eq.s32.totalorder %s113, 0
      %s116 = sadd.s32 %s115, 1
      %s117 = scalar_select %p114, %s115, %s116
      %p120 = pneg %p114
      %p121 = scmp.eq.s32.totalorder %s16, 1
      %p122 = por %p120, %p121
      %p123 = scmp.ne.s32.totalorder %s115, %s118
      %p124 = scmp.eq.s32.totalorder %s16, 0
      %p125 = por %p123, %p124
      %p126 = scmp.ne.s32.totalorder %s115, %s118
      %p127 = scmp.eq.s32.totalorder %s21, 1
      %p128 = por %p126, %p127
      %p129 = scmp.ne.s32.totalorder %s118, %s119
      %p130 = scmp.eq.s32.totalorder %s21, 0
      %p131 = por %p129, %p130
      %p132 = scmp.ne.s32.totalorder %s118, %s119
      %p133 = scmp.eq.s32.totalorder %s22, 1
      %p134 = por %p132, %p133
      %p136 = scmp.ne.s32.totalorder %s119, %s135
      %p137 = scmp.eq.s32.totalorder %s22, 0
      %p138 = por %p136, %p137
      %p139 = scmp.le.s32.totalorder 1, %s16
      %p140 = scmp.lt.s32.totalorder %s16, 3
      %p141 = pnand %p139, %p140
      %p142 = pneg %p141
      // Predicated region
      $region9: #{tpu_custom_call.1} parent=5 // pred_check
        _
      $region10: #{tpu_custom_call.1} parent=5 // pred_check_branch
        %144 = sbr.rel (%p141) target = $region12
      $region11: #{tpu_custom_call.1} parent=5 // pred_region
        %s145 = ssub.s32 %s16, 1
        // Predicated region
        $region13: #{tpu_custom_call.1} parent=11 // pred_check
          %p146 = pneg %p63
        $region14: #{tpu_custom_call.1} parent=11 // pred_check_branch
          %148 = sbr.rel (%p146) target = $region16
        $region15: #{tpu_custom_call.1} parent=11 // pred_region
          _
        $region16: #{tpu_custom_call.1} parent=11 // pred_fallthru
          _
        // Predicated region
        $region17: #{tpu_custom_call.1} parent=11 // pred_check
          %p149 = pneg %p84
        $region18: #{tpu_custom_call.1} parent=11 // pred_check_branch
          %151 = sbr.rel (%p149) target = $region20
        $region19: #{tpu_custom_call.1} parent=11 // pred_region
          _
        $region20: #{tpu_custom_call.1} parent=11 // pred_fallthru
          _
        // Predicated region
        $region21: #{tpu_custom_call.1} parent=11 // pred_check
          %p152 = pneg %p105
        $region22: #{tpu_custom_call.1} parent=11 // pred_check_branch
          %154 = sbr.rel (%p152) target = $region24
        $region23: #{tpu_custom_call.1} parent=11 // pred_region
          _
        $region24: #{tpu_custom_call.1} parent=11 // pred_fallthru
          _
      $region12: #{tpu_custom_call.1} parent=5 // pred_fallthru
        _
      %p155 = scmp.lt.s32.totalorder %s16, 2
      // Predicated region
      $region25: #{tpu_custom_call.1} parent=5 // pred_check
        %p156 = pneg %p155
      $region26: #{tpu_custom_call.1} parent=5 // pred_check_branch
        %158 = sbr.rel (%p156) target = $region28
      $region27: #{tpu_custom_call.1} parent=5 // pred_region
        // Predicated region
        $region29: #{tpu_custom_call.1} parent=27 // pred_check
          %p159 = pneg %p36
        $region30: #{tpu_custom_call.1} parent=27 // pred_check_branch
          %161 = sbr.rel (%p159) target = $region32
        $region31: #{tpu_custom_call.1} parent=27 // pred_region
          %s162 = sand.u32 %s26, 1
          %s163 = scalar_lea.sflag [#allocation3], %s162
          %s164 = sand.u32 %s26, 1
          %s165 = smul.addr %s164, 96
          %s166 = scalar_lea.vmem [#allocation2], %s165
          %s167 = smul.u32 4, %s16
          %s169 = ssub.s32 1536, 1536
          %170 = vsyncadd %s163, %s169
          %s171 = smul.addr %s167, 128
          %s172 = scalar_lea.hbm %s0, %s171
          %s173 = sshll.u32 %s166, 4
          %s174 = int_to_ptr.vmem [resolvable:$true] %s173
          %179 = dma.hbm_to_vmem [thread:$0]  %s172, 1536, %s174, %s163, 1024, 512, 32
        $region32: #{tpu_custom_call.1} parent=27 // pred_fallthru
          _
      $region28: #{tpu_custom_call.1} parent=5 // pred_fallthru
        _
      %p180 = scmp.le.s32.totalorder 1, %s16
      %p181 = scmp.lt.s32.totalorder %s16, 3
      %p182 = pnand %p180, %p181
      %p183 = pneg %p182
      // Predicated region
      $region33: #{tpu_custom_call.1} parent=5 // pred_check
        _
      $region34: #{tpu_custom_call.1} parent=5 // pred_check_branch
        %185 = sbr.rel (%p182) target = $region36
      $region35: #{tpu_custom_call.1} parent=5 // pred_region
        %s186 = ssub.s32 %s16, 1
        %s187 = sand.u32 %s29, 1
        %s188 = scalar_lea.sflag [#allocation3], %s187
        %s189 = sand.u32 %s29, 1
        %s190 = smul.addr %s189, 96
        %s191 = scalar_lea.vmem [#allocation2], %s190
        // Predicated region
        $region37: #{tpu_custom_call.1} parent=35 // pred_check
          %p192 = pneg %p42
        $region38: #{tpu_custom_call.1} parent=35 // pred_check_branch
          %194 = sbr.rel (%p192) target = $region40
        $region39: #{tpu_custom_call.1} parent=35 // pred_region
          %195 = dma.done %s188, 1536
        $region40: #{tpu_custom_call.1} parent=35 // pred_fallthru
          _
        %s196 = sand.u32 %s29, 1
        %s197 = scalar_lea.sflag [#allocation3], %s196
        %s198 = sand.u32 %s29, 1
        %s199 = smul.addr %s198, 96
        %s200 = scalar_lea.vmem [#allocation2], %s199
        %p201 = pneg %p42
        %p202 = pneg %p39
        %p203 = pneg %p63
        %p204 = pneg %p60
        %p205 = pneg %p84
        %p206 = pneg %p81
        %p207 = pneg %p105
        %p208 = pneg %p102
        %p209 = pneg %p131
        %p210 = pneg %p128
        %s211 = sand.u32 %s118, 1
        %s212 = scalar_lea.sflag [#allocation4], %s211
        %s213 = sand.u32 %s118, 1
        %s214 = smul.addr %s213, 64
        %s215 = scalar_lea.vmem [#allocation5], %s214
        %s216 = smul.u32 4, %s21
        %s217 = smul.u32 4, %s21
        %v218 = vld [vmem:[%s191] sm:$0xff]
        %v219 = vld [vmem:[%s191 + $0x8] sm:$0xff]
        %v220 = vld [vmem:[%s191 + $0x10] sm:$0xff]
        %v221 = vld [vmem:[%s191 + $0x18] sm:$0xff]
        %v222 = vld [vmem:[%s191 + $0x20] sm:$0xff]
        %v223 = vld [vmem:[%s191 + $0x28] sm:$0xff]
        %v224 = vld [vmem:[%s191 + $0x30] sm:$0xff]
        %v225 = vld [vmem:[%s191 + $0x38] sm:$0xff]
        %v226 = vld [vmem:[%s191 + $0x40] sm:$0xff]
        %v227 = vld [vmem:[%s191 + $0x48] sm:$0xff]
        %v228 = vld [vmem:[%s191 + $0x50] sm:$0xff]
        %v229 = vld [vmem:[%s191 + $0x58] sm:$0xff]
        %v230 = vld [vmem:[%s1] sm:$0xff]
        %v231 = vld [vmem:[%s1 + $0x8] sm:$0xff]
        %v232 = vld [vmem:[%s1 + $0x10] sm:$0xff]
        %v233 = vld [vmem:[%s1 + $0x18] sm:$0xff]
        %v234 = vld [vmem:[%s1 + $0x20] sm:$0xff]
        %v235 = vld [vmem:[%s1 + $0x28] sm:$0xff]
        %v236 = vld [vmem:[%s1 + $0x30] sm:$0xff]
        %v237 = vld [vmem:[%s1 + $0x38] sm:$0xff]
        %v238 = vld [vmem:[%s1 + $0x40] sm:$0xff]
        %v239 = vld [vmem:[%s1 + $0x48] sm:$0xff]
        %v240 = vld [vmem:[%s1 + $0x50] sm:$0xff]
        %v241 = vld [vmem:[%s1 + $0x58] sm:$0xff]
        %v242 = vld [vmem:[%s2] sm:$0xff]
        %v243 = vld [vmem:[%s2 + $0x8] sm:$0xff]
        %v244 = vld [vmem:[%s2 + $0x10] sm:$0xff]
        %v245 = vld [vmem:[%s2 + $0x18] sm:$0xff]
        %v246 = vld [vmem:[%s3] sm:$0x3f]
        %vm247 = vcmask 195584
        %v249 = vsel %vm247, %v230, 0
        %v252 = vsel %vm247, %v231, 0
        %v255 = vsel %vm247, %v232, 0
        %v258 = vsel %vm247, %v233, 0
        %v261 = vsel %vm247, %v234, 0
        %v264 = vsel %vm247, %v235, 0
        %v267 = vsel %vm247, %v236, 0
        %v270 = vsel %vm247, %v237, 0
        %v273 = vsel %vm247, %v238, 0
        %v276 = vsel %vm247, %v239, 0
        %v279 = vsel %vm247, %v240, 0
        %v282 = vsel %vm247, %v241, 0
        %284 = vmatprep.subr.mxu0 %v219
        %285 = vmatpush1.msra.mxu0 %v218
        %286 = vmatprep.subr.mxu0 %v223
        %287 = vmatpush1.msra.mxu0 %v222
        %288 = vmatprep.subr.mxu0 %v227
        %289 = vmatpush1.msra.mxu0 %v226
        %290 = vmatprep.subr.mxu0 0.0
        %291 = vmatpush1.msra.mxu0 0.0
        %292 = vmatprep.subr.mxu0 0.0
        %293 = vmatpush1.msra.mxu0 0.0
        %294 = vmatprep.subr.mxu0 0.0
        %295 = vmatpush1.msra.mxu0 0.0
        %296 = vmatprep.subr.mxu0 0.0
        %297 = vmatpush1.msra.mxu0 0.0
        %298 = vmatprep.subr.mxu0 0.0
        %299 = vmatpush1.msra.mxu0 0.0
        %300 = vmatprep.subr.mxu0 0.0
        %301 = vmatpush1.msra.mxu0 0.0
        %302 = vmatprep.subr.mxu0 0.0
        %303 = vmatpush1.msra.mxu0 0.0
        %304 = vmatprep.subr.mxu0 0.0
        %305 = vmatpush1.msra.mxu0 0.0
        %306 = vmatprep.subr.mxu0 0.0
        %307 = vmatpush1.msra.mxu0 0.0
        %308 = vmatprep.subr.mxu0 0.0
        %309 = vmatpush1.msra.mxu0 0.0
        %310 = vmatprep.subr.mxu0 0.0
        %311 = vmatpush1.msra.mxu0 0.0
        %312 = vmatprep.subr.mxu0 0.0
        %313 = vmatpush1.msra.mxu0 0.0
        %314 = vmatprep.subr.mxu0 0.0
        %315 = vmatpush1.msra.mxu0 0.0
        %316 = vmatprep.subr.mxu0 0.0
        %317 = vmatpush1.msra.mxu0 0.0
        %318 = vmatprep.subr.mxu0 0.0
        %319 = vmatpush1.msra.mxu0 0.0
        %320 = vmatprep.subr.mxu0 0.0
        %321 = vmatpush1.msra.mxu0 0.0
        %322 = vmatprep.subr.mxu0 0.0
        %323 = vmatpush1.msra.mxu0 0.0
        %324 = vmatprep.subr.mxu0 0.0
        %325 = vmatpush1.msra.mxu0 0.0
        %326 = vmatprep.subr.mxu0 0.0
        %327 = vmatpush1.msra.mxu0 0.0
        %328 = vmatprep.subr.mxu0 0.0
        %329 = vmatpush1.msra.mxu0 0.0
        %330 = vmatprep.subr.mxu0 0.0
        %331 = vmatpush1.msra.mxu0 0.0
        %332 = vmatprep.subr.mxu0 0.0
        %333 = vmatpush1.msra.mxu0 0.0
        %334 = vmatprep.subr.mxu0 0.0
        %335 = vmatpush1.msra.mxu0 0.0
        %336 = vmatprep.subr.mxu0 0.0
        %337 = vmatpush1.msra.mxu0 0.0
        %338 = vmatprep.subr.mxu0 0.0
        %339 = vmatpush1.msra.mxu0 0.0
        %340 = vmatprep.subr.mxu0 0.0
        %341 = vmatpush1.msra.mxu0 0.0
        %342 = vmatprep.subr.mxu0 0.0
        %343 = vmatpush1.msra.mxu0 0.0
        %344 = vmatprep.subr.mxu0 0.0
        %345 = vmatpush1.msra.mxu0 0.0
        %346 = vmatprep.subr.mxu0 0.0
        %347 = vmatpush1.msra.mxu0 0.0
        %348 = vmatprep.mubr.f32.mxu0 0.0
        %349 = vmatmul.mubr.f32.gmra.mrb[0].mxu0 %v249
        %v350 = vpop.f32.mrb[0].mxu0
        %v351 = vadd.f32 0.0, %v350
        %v352 = vpop.f32.mrb[0].mxu0
        %v353 = vadd.f32 0.0, %v352
        %354 = vmatprep.mubr.f32.mxu0 0.0
        %355 = vmatmul.mubr.f32.gmra.mrb[0].mxu0 %v252
        %v356 = vpop.f32.mrb[0].mxu0
        %v357 = vadd.f32 0.0, %v356
        %v358 = vpop.f32.mrb[0].mxu0
        %v359 = vadd.f32 0.0, %v358
        %360 = vmatprep.mubr.f32.mxu0 0.0
        %361 = vmatmul.mubr.f32.gmra.mrb[0].mxu0 %v255
        %v362 = vpop.f32.mrb[0].mxu0
        %v363 = vadd.f32 0.0, %v362
        %v364 = vpop.f32.mrb[0].mxu0
        %v365 = vadd.f32 0.0, %v364
        %366 = vmatprep.mubr.f32.mxu0 0.0
        %367 = vmatmul.mubr.f32.gmra.mrb[0].mxu0 %v258
        %v368 = vpop.f32.mrb[0].mxu0
        %v369 = vadd.f32 0.0, %v368
        %v370 = vpop.f32.mrb[0].mxu0
        %v371 = vadd.f32 0.0, %v370
        %372 = vmatprep.mubr.f32.mxu0 0.0
        %373 = vmatmul.mubr.f32.gmra.mrb[0].mxu0 %v261
        %v374 = vpop.f32.mrb[0].mxu0
        %v375 = vadd.f32 0.0, %v374
        %v376 = vpop.f32.mrb[0].mxu0
        %v377 = vadd.f32 0.0, %v376
        %378 = vmatprep.mubr.f32.mxu0 0.0
        %379 = vmatmul.mubr.f32.gmra.mrb[0].mxu0 %v264
        %v380 = vpop.f32.mrb[0].mxu0
        %v381 = vadd.f32 0.0, %v380
        %v382 = vpop.f32.mrb[0].mxu0
        %v383 = vadd.f32 0.0, %v382
        %384 = vmatprep.mubr.f32.mxu0 0.0
        %385 = vmatmul.mubr.f32.gmra.mrb[0].mxu0 %v267
        %v386 = vpop.f32.mrb[0].mxu0
        %v387 = vadd.f32 0.0, %v386
        %v388 = vpop.f32.mrb[0].mxu0
        %v389 = vadd.f32 0.0, %v388
        %390 = vmatprep.mubr.f32.mxu0 0.0
        %391 = vmatmul.mubr.f32.gmra.mrb[0].mxu0 %v270
        %v392 = vpop.f32.mrb[0].mxu0
        %v393 = vadd.f32 0.0, %v392
        %v394 = vpop.f32.mrb[0].mxu0
        %v395 = vadd.f32 0.0, %v394
        %396 = vmatprep.mubr.f32.mxu0 0.0
        %397 = vmatmul.mubr.f32.gmra.mrb[0].mxu0 %v273
        %v398 = vpop.f32.mrb[0].mxu0
        %v399 = vadd.f32 0.0, %v398
        %v400 = vpop.f32.mrb[0].mxu0
        %v401 = vadd.f32 0.0, %v400
        %402 = vmatprep.mubr.f32.mxu0 0.0
        %403 = vmatmul.mubr.f32.gmra.mrb[0].mxu0 %v276
        %v404 = vpop.f32.mrb[0].mxu0
        %v405 = vadd.f32 0.0, %v404
        %v406 = vpop.f32.mrb[0].mxu0
        %v407 = vadd.f32 0.0, %v406
        %408 = vmatprep.mubr.f32.mxu0 0.0
        %409 = vmatmul.mubr.f32.gmra.mrb[0].mxu0 %v279
        %v410 = vpop.f32.mrb[0].mxu0
        %v411 = vadd.f32 0.0, %v410
        %v412 = vpop.f32.mrb[0].mxu0
        %v413 = vadd.f32 0.0, %v412
        %414 = vmatprep.mubr.f32.mxu0 0.0
        %415 = vmatmul.mubr.f32.gmra.mrb[0].mxu0 %v282
        %v416 = vpop.f32.mrb[0].mxu0
        %v417 = vadd.f32 0.0, %v416
        %v418 = vpop.f32.mrb[0].mxu0
        %v419 = vadd.f32 0.0, %v418
        %420 = vdwg.mxu0
        %421 = vmatprep.subr.mxu0 %v221
        %422 = vmatpush1.msra.mxu0 %v220
        %423 = vmatprep.subr.mxu0 %v225
        %424 = vmatpush1.msra.mxu0 %v224
        %425 = vmatprep.subr.mxu0 %v229
        %426 = vmatpush1.msra.mxu0 %v228
        %427 = vmatprep.subr.mxu0 0.0
        %428 = vmatpush1.msra.mxu0 0.0
        %429 = vmatprep.subr.mxu0 0.0
        %430 = vmatpush1.msra.mxu0 0.0
        %431 = vmatprep.subr.mxu0 0.0
        %432 = vmatpush1.msra.mxu0 0.0
        %433 = vmatprep.subr.mxu0 0.0
        %434 = vmatpush1.msra.mxu0 0.0
        %435 = vmatprep.subr.mxu0 0.0
        %436 = vmatpush1.msra.mxu0 0.0
        %437 = vmatprep.subr.mxu0 0.0
        %438 = vmatpush1.msra.mxu0 0.0
        %439 = vmatprep.subr.mxu0 0.0
        %440 = vmatpush1.msra.mxu0 0.0
        %441 = vmatprep.subr.mxu0 0.0
        %442 = vmatpush1.msra.mxu0 0.0
        %443 = vmatprep.subr.mxu0 0.0
        %444 = vmatpush1.msra.mxu0 0.0
        %445 = vmatprep.subr.mxu0 0.0
        %446 = vmatpush1.msra.mxu0 0.0
        %447 = vmatprep.subr.mxu0 0.0
        %448 = vmatpush1.msra.mxu0 0.0
        %449 = vmatprep.subr.mxu0 0.0
        %450 = vmatpush1.msra.mxu0 0.0
        %451 = vmatprep.subr.mxu0 0.0
        %452 = vmatpush1.msra.mxu0 0.0
        %453 = vmatprep.subr.mxu0 0.0
        %454 = vmatpush1.msra.mxu0 0.0
        %455 = vmatprep.subr.mxu0 0.0
        %456 = vmatpush1.msra.mxu0 0.0
        %457 = vmatprep.subr.mxu0 0.0
        %458 = vmatpush1.msra.mxu0 0.0
        %459 = vmatprep.subr.mxu0 0.0
        %460 = vmatpush1.msra.mxu0 0.0
        %461 = vmatprep.subr.mxu0 0.0
        %462 = vmatpush1.msra.mxu0 0.0
        %463 = vmatprep.subr.mxu0 0.0
        %464 = vmatpush1.msra.mxu0 0.0
        %465 = vmatprep.subr.mxu0 0.0
        %466 = vmatpush1.msra.mxu0 0.0
        %467 = vmatprep.subr.mxu0 0.0
        %468 = vmatpush1.msra.mxu0 0.0
        %469 = vmatprep.subr.mxu0 0.0
        %470 = vmatpush1.msra.mxu0 0.0
        %471 = vmatprep.subr.mxu0 0.0
        %472 = vmatpush1.msra.mxu0 0.0
        %473 = vmatprep.subr.mxu0 0.0
        %474 = vmatpush1.msra.mxu0 0.0
        %475 = vmatprep.subr.mxu0 0.0
        %476 = vmatpush1.msra.mxu0 0.0
        %477 = vmatprep.subr.mxu0 0.0
        %478 = vmatpush1.msra.mxu0 0.0
        %479 = vmatprep.subr.mxu0 0.0
        %480 = vmatpush1.msra.mxu0 0.0
        %481 = vmatprep.subr.mxu0 0.0
        %482 = vmatpush1.msra.mxu0 0.0
        %483 = vmatprep.subr.mxu0 0.0
        %484 = vmatpush1.msra.mxu0 0.0
        %485 = vmatprep.mubr.f32.mxu0 0.0
        %486 = vmatmul.mubr.f32.gmra.mrb[0].mxu0 %v249
        %v487 = vpop.f32.mrb[0].mxu0
        %v488 = vadd.f32 0.0, %v487
        %v489 = vpop.f32.mrb[0].mxu0
        %v490 = vadd.f32 0.0, %v489
        %491 = vmatprep.mubr.f32.mxu0 0.0
        %492 = vmatmul.mubr.f32.gmra.mrb[0].mxu0 %v252
        %v493 = vpop.f32.mrb[0].mxu0
        %v494 = vadd.f32 0.0, %v493
        %v495 = vpop.f32.mrb[0].mxu0
        %v496 = vadd.f32 0.0, %v495
        %497 = vmatprep.mubr.f32.mxu0 0.0
        %498 = vmatmul.mubr.f32.gmra.mrb[0].mxu0 %v255
        %v499 = vpop.f32.mrb[0].mxu0
        %v500 = vadd.f32 0.0, %v499
        %v501 = vpop.f32.mrb[0].mxu0
        %v502 = vadd.f32 0.0, %v501
        %503 = vmatprep.mubr.f32.mxu0 0.0
        %504 = vmatmul.mubr.f32.gmra.mrb[0].mxu0 %v258
        %v505 = vpop.f32.mrb[0].mxu0
        %v506 = vadd.f32 0.0, %v505
        %v507 = vpop.f32.mrb[0].mxu0
        %v508 = vadd.f32 0.0, %v507
        %509 = vmatprep.mubr.f32.mxu0 0.0
        %510 = vmatmul.mubr.f32.gmra.mrb[0].mxu0 %v261
        %v511 = vpop.f32.mrb[0].mxu0
        %v512 = vadd.f32 0.0, %v511
        %v513 = vpop.f32.mrb[0].mxu0
        %v514 = vadd.f32 0.0, %v513
        %515 = vmatprep.mubr.f32.mxu0 0.0
        %516 = vmatmul.mubr.f32.gmra.mrb[0].mxu0 %v264
        %v517 = vpop.f32.mrb[0].mxu0
        %v518 = vadd.f32 0.0, %v517
        %v519 = vpop.f32.mrb[0].mxu0
        %v520 = vadd.f32 0.0, %v519
        %521 = vmatprep.mubr.f32.mxu0 0.0
        %522 = vmatmul.mubr.f32.gmra.mrb[0].mxu0 %v267
        %v523 = vpop.f32.mrb[0].mxu0
        %v524 = vadd.f32 0.0, %v523
        %v525 = vpop.f32.mrb[0].mxu0
        %v526 = vadd.f32 0.0, %v525
        %527 = vmatprep.mubr.f32.mxu0 0.0
        %528 = vmatmul.mubr.f32.gmra.mrb[0].mxu0 %v270
        %v529 = vpop.f32.mrb[0].mxu0
        %v530 = vadd.f32 0.0, %v529
        %v531 = vpop.f32.mrb[0].mxu0
        %v532 = vadd.f32 0.0, %v531
        %533 = vmatprep.mubr.f32.mxu0 0.0
        %534 = vmatmul.mubr.f32.gmra.mrb[0].mxu0 %v273
        %v535 = vpop.f32.mrb[0].mxu0
        %v536 = vadd.f32 0.0, %v535
        %v537 = vpop.f32.mrb[0].mxu0
        %v538 = vadd.f32 0.0, %v537
        %539 = vmatprep.mubr.f32.mxu0 0.0
        %540 = vmatmul.mubr.f32.gmra.mrb[0].mxu0 %v276
        %v541 = vpop.f32.mrb[0].mxu0
        %v542 = vadd.f32 0.0, %v541
        %v543 = vpop.f32.mrb[0].mxu0
        %v544 = vadd.f32 0.0, %v543
        %545 = vmatprep.mubr.f32.mxu0 0.0
        %546 = vmatmul.mubr.f32.gmra.mrb[0].mxu0 %v279
        %v547 = vpop.f32.mrb[0].mxu0
        %v548 = vadd.f32 0.0, %v547
        %v549 = vpop.f32.mrb[0].mxu0
        %v550 = vadd.f32 0.0, %v549
        %551 = vmatprep.mubr.f32.mxu0 0.0
        %552 = vmatmul.mubr.f32.gmra.mrb[0].mxu0 %v282
        %v553 = vpop.f32.mrb[0].mxu0
        %v554 = vadd.f32 0.0, %v553
        %v555 = vpop.f32.mrb[0].mxu0
        %v556 = vadd.f32 0.0, %v555
        %557 = vdwg.mxu0
        %v558 = vmul.f32 %v351, %v351
        %v559 = vmul.f32 %v353, %v353
        %v560 = vmul.f32 %v488, %v488
        %v561 = vmul.f32 %v490, %v490
        %v562 = vmul.f32 %v357, %v357
        %v563 = vmul.f32 %v359, %v359
        %v564 = vmul.f32 %v494, %v494
        %v565 = vmul.f32 %v496, %v496
        %v566 = vmul.f32 %v363, %v363
        %v567 = vmul.f32 %v365, %v365
        %v568 = vmul.f32 %v500, %v500
        %v569 = vmul.f32 %v502, %v502
        %v570 = vmul.f32 %v369, %v369
        %v571 = vmul.f32 %v371, %v371
        %v572 = vmul.f32 %v506, %v506
        %v573 = vmul.f32 %v508, %v508
        %v574 = vmul.f32 %v375, %v375
        %v575 = vmul.f32 %v377, %v377
        %v576 = vmul.f32 %v512, %v512
        %v577 = vmul.f32 %v514, %v514
        %v578 = vmul.f32 %v381, %v381
        %v579 = vmul.f32 %v383, %v383
        %v580 = vmul.f32 %v518, %v518
        %v581 = vmul.f32 %v520, %v520
        %v582 = vsub.f32 %v558, %v570
        %v583 = vsub.f32 %v559, %v571
        %v584 = vsub.f32 %v560, %v572
        %v585 = vsub.f32 %v561, %v573
        %v586 = vsub.f32 %v562, %v574
        %v587 = vsub.f32 %v563, %v575
        %v588 = vsub.f32 %v564, %v576
        %v589 = vsub.f32 %v565, %v577
        %v590 = vsub.f32 %v566, %v578
        %v591 = vsub.f32 %v567, %v579
        %v592 = vsub.f32 %v568, %v580
        %v593 = vsub.f32 %v569, %v581
        %v594 = vmul.f32 %v387, %v387
        %v595 = vmul.f32 %v389, %v389
        %v596 = vmul.f32 %v524, %v524
        %v597 = vmul.f32 %v526, %v526
        %v598 = vmul.f32 %v393, %v393
        %v599 = vmul.f32 %v395, %v395
        %v600 = vmul.f32 %v530, %v530
        %v601 = vmul.f32 %v532, %v532
        %v602 = vmul.f32 %v399, %v399
        %v603 = vmul.f32 %v401, %v401
        %v604 = vmul.f32 %v536, %v536
        %v605 = vmul.f32 %v538, %v538
        %v606 = vsub.f32 %v582, %v594
        %v607 = vsub.f32 %v583, %v595
        %v608 = vsub.f32 %v584, %v596
        %v609 = vsub.f32 %v585, %v597
        %v610 = vsub.f32 %v586, %v598
        %v611 = vsub.f32 %v587, %v599
        %v612 = vsub.f32 %v588, %v600
        %v613 = vsub.f32 %v589, %v601
        %v614 = vsub.f32 %v590, %v602
        %v615 = vsub.f32 %v591, %v603
        %v616 = vsub.f32 %v592, %v604
        %v617 = vsub.f32 %v593, %v605
        %v618 = vmul.f32 %v405, %v405
        %v619 = vmul.f32 %v407, %v407
        %v620 = vmul.f32 %v542, %v542
        %v621 = vmul.f32 %v544, %v544
        %v622 = vmul.f32 %v411, %v411
        %v623 = vmul.f32 %v413, %v413
        %v624 = vmul.f32 %v548, %v548
        %v625 = vmul.f32 %v550, %v550
        %v626 = vmul.f32 %v417, %v417
        %v627 = vmul.f32 %v419, %v419
        %v628 = vmul.f32 %v554, %v554
        %v629 = vmul.f32 %v556, %v556
        %v630 = vsub.f32 %v606, %v618
        %v631 = vsub.f32 %v607, %v619
        %v632 = vsub.f32 %v608, %v620
        %v633 = vsub.f32 %v609, %v621
        %v634 = vsub.f32 %v610, %v622
        %v635 = vsub.f32 %v611, %v623
        %v636 = vsub.f32 %v612, %v624
        %v637 = vsub.f32 %v613, %v625
        %v638 = vsub.f32 %v614, %v626
        %v639 = vsub.f32 %v615, %v627
        %v640 = vsub.f32 %v616, %v628
        %v641 = vsub.f32 %v617, %v629
        %v642 = vrsqrt.pop %v630
        %v643 = vmul.f32 %v630, %v642
        %vm644 = vcmp.eq.f32.partialorder %v630, inf
        %v645 = vsel %vm644, %v630, %v643
        %vm646 = vcmp.eq.f32.partialorder %v630, 0.0
        %v647 = vand.u32 %v630, 2147483648
        %v648 = vsel %vm646, %v647, %v645
        %v649 = vrsqrt.pop %v631
        %v650 = vmul.f32 %v631, %v649
        %vm651 = vcmp.eq.f32.partialorder %v631, inf
        %v652 = vsel %vm651, %v631, %v650
        %vm653 = vcmp.eq.f32.partialorder %v631, 0.0
        %v654 = vand.u32 %v631, 2147483648
        %v655 = vsel %vm653, %v654, %v652
        %v656 = vrsqrt.pop %v632
        %v657 = vmul.f32 %v632, %v656
        %vm658 = vcmp.eq.f32.partialorder %v632, inf
        %v659 = vsel %vm658, %v632, %v657
        %vm660 = vcmp.eq.f32.partialorder %v632, 0.0
        %v661 = vand.u32 %v632, 2147483648
        %v662 = vsel %vm660, %v661, %v659
        %v663 = vrsqrt.pop %v633
        %v664 = vmul.f32 %v633, %v663
        %vm665 = vcmp.eq.f32.partialorder %v633, inf
        %v666 = vsel %vm665, %v633, %v664
        %vm667 = vcmp.eq.f32.partialorder %v633, 0.0
        %v668 = vand.u32 %v633, 2147483648
        %v669 = vsel %vm667, %v668, %v666
        %v670 = vrsqrt.pop %v634
        %v671 = vmul.f32 %v634, %v670
        %vm672 = vcmp.eq.f32.partialorder %v634, inf
        %v673 = vsel %vm672, %v634, %v671
        %vm674 = vcmp.eq.f32.partialorder %v634, 0.0
        %v675 = vand.u32 %v634, 2147483648
        %v676 = vsel %vm674, %v675, %v673
        %v677 = vrsqrt.pop %v635
        %v678 = vmul.f32 %v635, %v677
        %vm679 = vcmp.eq.f32.partialorder %v635, inf
        %v680 = vsel %vm679, %v635, %v678
        %vm681 = vcmp.eq.f32.partialorder %v635, 0.0
        %v682 = vand.u32 %v635, 2147483648
        %v683 = vsel %vm681, %v682, %v680
        %v684 = vrsqrt.pop %v636
        %v685 = vmul.f32 %v636, %v684
        %vm686 = vcmp.eq.f32.partialorder %v636, inf
        %v687 = vsel %vm686, %v636, %v685
        %vm688 = vcmp.eq.f32.partialorder %v636, 0.0
        %v689 = vand.u32 %v636, 2147483648
        %v690 = vsel %vm688, %v689, %v687
        %v691 = vrsqrt.pop %v637
        %v692 = vmul.f32 %v637, %v691
        %vm693 = vcmp.eq.f32.partialorder %v637, inf
        %v694 = vsel %vm693, %v637, %v692
        %vm695 = vcmp.eq.f32.partialorder %v637, 0.0
        %v696 = vand.u32 %v637, 2147483648
        %v697 = vsel %vm695, %v696, %v694
        %v698 = vrsqrt.pop %v638
        %v699 = vmul.f32 %v638, %v698
        %vm700 = vcmp.eq.f32.partialorder %v638, inf
        %v701 = vsel %vm700, %v638, %v699
        %vm702 = vcmp.eq.f32.partialorder %v638, 0.0
        %v703 = vand.u32 %v638, 2147483648
        %v704 = vsel %vm702, %v703, %v701
        %v705 = vrsqrt.pop %v639
        %v706 = vmul.f32 %v639, %v705
        %vm707 = vcmp.eq.f32.partialorder %v639, inf
        %v708 = vsel %vm707, %v639, %v706
        %vm709 = vcmp.eq.f32.partialorder %v639, 0.0
        %v710 = vand.u32 %v639, 2147483648
        %v711 = vsel %vm709, %v710, %v708
        %v712 = vrsqrt.pop %v640
        %v713 = vmul.f32 %v640, %v712
        %vm714 = vcmp.eq.f32.partialorder %v640, inf
        %v715 = vsel %vm714, %v640, %v713
        %vm716 = vcmp.eq.f32.partialorder %v640, 0.0
        %v717 = vand.u32 %v640, 2147483648
        %v718 = vsel %vm716, %v717, %v715
        %v719 = vrsqrt.pop %v641
        %v720 = vmul.f32 %v641, %v719
        %vm721 = vcmp.eq.f32.partialorder %v641, inf
        %v722 = vsel %vm721, %v641, %v720
        %vm723 = vcmp.eq.f32.partialorder %v641, 0.0
        %v724 = vand.u32 %v641, 2147483648
        %v725 = vsel %vm723, %v724, %v722
        %vm726 = vcmp.ne.f32.partialorder %v648, %v648
        %vm727 = vcmp.ne.f32.partialorder %v655, %v655
        %vm728 = vcmp.ne.f32.partialorder %v662, %v662
        %vm729 = vcmp.ne.f32.partialorder %v669, %v669
        %vm730 = vcmp.ne.f32.partialorder %v676, %v676
        %vm731 = vcmp.ne.f32.partialorder %v683, %v683
        %vm732 = vcmp.ne.f32.partialorder %v690, %v690
        %vm733 = vcmp.ne.f32.partialorder %v697, %v697
        %vm734 = vcmp.ne.f32.partialorder %v704, %v704
        %vm735 = vcmp.ne.f32.partialorder %v711, %v711
        %vm736 = vcmp.ne.f32.partialorder %v718, %v718
        %vm737 = vcmp.ne.f32.partialorder %v725, %v725
        %v738 = vsel %vm726, 0.0, %v648
        %v739 = vsel %vm727, 0.0, %v655
        %v740 = vsel %vm728, 0.0, %v662
        %v741 = vsel %vm729, 0.0, %v669
        %v742 = vsel %vm730, 0.0, %v676
        %v743 = vsel %vm731, 0.0, %v683
        %v744 = vsel %vm732, 0.0, %v690
        %v745 = vsel %vm733, 0.0, %v697
        %v746 = vsel %vm734, 0.0, %v704
        %v747 = vsel %vm735, 0.0, %v711
        %v748 = vsel %vm736, 0.0, %v718
        %v749 = vsel %vm737, 0.0, %v725
        %v751 = vsel %vm247, %v242, 0
        %v754 = vsel %vm247, %v243, 0
        %v757 = vsel %vm247, %v244, 0
        %v760 = vsel %vm247, %v245, 0
        %762 = vmatprep.subr.mxu0 %v739
        %763 = vmatpush1.msra.mxu0 %v738
        %764 = vmatprep.subr.mxu0 %v743
        %765 = vmatpush1.msra.mxu0 %v742
        %766 = vmatprep.subr.mxu0 %v747
        %767 = vmatpush1.msra.mxu0 %v746
        %768 = vmatprep.subr.mxu0 0.0
        %769 = vmatpush1.msra.mxu0 0.0
        %770 = vmatprep.subr.mxu0 0.0
        %771 = vmatpush1.msra.mxu0 0.0
        %772 = vmatprep.subr.mxu0 0.0
        %773 = vmatpush1.msra.mxu0 0.0
        %774 = vmatprep.subr.mxu0 0.0
        %775 = vmatpush1.msra.mxu0 0.0
        %776 = vmatprep.subr.mxu0 0.0
        %777 = vmatpush1.msra.mxu0 0.0
        %778 = vmatprep.subr.mxu0 0.0
        %779 = vmatpush1.msra.mxu0 0.0
        %780 = vmatprep.subr.mxu0 0.0
        %781 = vmatpush1.msra.mxu0 0.0
        %782 = vmatprep.subr.mxu0 0.0
        %783 = vmatpush1.msra.mxu0 0.0
        %784 = vmatprep.subr.mxu0 0.0
        %785 = vmatpush1.msra.mxu0 0.0
        %786 = vmatprep.subr.mxu0 0.0
        %787 = vmatpush1.msra.mxu0 0.0
        %788 = vmatprep.subr.mxu0 0.0
        %789 = vmatpush1.msra.mxu0 0.0
        %790 = vmatprep.subr.mxu0 0.0
        %791 = vmatpush1.msra.mxu0 0.0
        %792 = vmatprep.subr.mxu0 0.0
        %793 = vmatpush1.msra.mxu0 0.0
        %794 = vmatprep.subr.mxu0 0.0
        %795 = vmatpush1.msra.mxu0 0.0
        %796 = vmatprep.subr.mxu0 0.0
        %797 = vmatpush1.msra.mxu0 0.0
        %798 = vmatprep.subr.mxu0 0.0
        %799 = vmatpush1.msra.mxu0 0.0
        %800 = vmatprep.subr.mxu0 0.0
        %801 = vmatpush1.msra.mxu0 0.0
        %802 = vmatprep.subr.mxu0 0.0
        %803 = vmatpush1.msra.mxu0 0.0
        %804 = vmatprep.subr.mxu0 0.0
        %805 = vmatpush1.msra.mxu0 0.0
        %806 = vmatprep.subr.mxu0 0.0
        %807 = vmatpush1.msra.mxu0 0.0
        %808 = vmatprep.subr.mxu0 0.0
        %809 = vmatpush1.msra.mxu0 0.0
        %810 = vmatprep.subr.mxu0 0.0
        %811 = vmatpush1.msra.mxu0 0.0
        %812 = vmatprep.subr.mxu0 0.0
        %813 = vmatpush1.msra.mxu0 0.0
        %814 = vmatprep.subr.mxu0 0.0
        %815 = vmatpush1.msra.mxu0 0.0
        %816 = vmatprep.subr.mxu0 0.0
        %817 = vmatpush1.msra.mxu0 0.0
        %818 = vmatprep.subr.mxu0 0.0
        %819 = vmatpush1.msra.mxu0 0.0
        %820 = vmatprep.subr.mxu0 0.0
        %821 = vmatpush1.msra.mxu0 0.0
        %822 = vmatprep.subr.mxu0 0.0
        %823 = vmatpush1.msra.mxu0 0.0
        %824 = vmatprep.subr.mxu0 0.0
        %825 = vmatpush1.msra.mxu0 0.0
        %826 = vmatprep.mubr.f32.mxu0 0.0
        %827 = vmatmul.mubr.f32.gmra.mrb[0].mxu0 %v751
        %v828 = vpop.f32.mrb[0].mxu0
        %v829 = vadd.f32 0.0, %v828
        %v830 = vpop.f32.mrb[0].mxu0
        %v831 = vadd.f32 0.0, %v830
        %832 = vmatprep.mubr.f32.mxu0 0.0
        %833 = vmatmul.mubr.f32.gmra.mrb[0].mxu0 %v754
        %v834 = vpop.f32.mrb[0].mxu0
        %v835 = vadd.f32 0.0, %v834
        %v836 = vpop.f32.mrb[0].mxu0
        %v837 = vadd.f32 0.0, %v836
        %838 = vmatprep.mubr.f32.mxu0 0.0
        %839 = vmatmul.mubr.f32.gmra.mrb[0].mxu0 %v757
        %v840 = vpop.f32.mrb[0].mxu0
        %v841 = vadd.f32 0.0, %v840
        %v842 = vpop.f32.mrb[0].mxu0
        %v843 = vadd.f32 0.0, %v842
        %844 = vmatprep.mubr.f32.mxu0 0.0
        %845 = vmatmul.mubr.f32.gmra.mrb[0].mxu0 %v760
        %v846 = vpop.f32.mrb[0].mxu0
        %v847 = vadd.f32 0.0, %v846
        %v848 = vpop.f32.mrb[0].mxu0
        %v849 = vadd.f32 0.0, %v848
        %850 = vdwg.mxu0
        %851 = vmatprep.subr.mxu0 %v741
        %852 = vmatpush1.msra.mxu0 %v740
        %853 = vmatprep.subr.mxu0 %v745
        %854 = vmatpush1.msra.mxu0 %v744
        %855 = vmatprep.subr.mxu0 %v749
        %856 = vmatpush1.msra.mxu0 %v748
        %857 = vmatprep.subr.mxu0 0.0
        %858 = vmatpush1.msra.mxu0 0.0
        %859 = vmatprep.subr.mxu0 0.0
        %860 = vmatpush1.msra.mxu0 0.0
        %861 = vmatprep.subr.mxu0 0.0
        %862 = vmatpush1.msra.mxu0 0.0
        %863 = vmatprep.subr.mxu0 0.0
        %864 = vmatpush1.msra.mxu0 0.0
        %865 = vmatprep.subr.mxu0 0.0
        %866 = vmatpush1.msra.mxu0 0.0
        %867 = vmatprep.subr.mxu0 0.0
        %868 = vmatpush1.msra.mxu0 0.0
        %869 = vmatprep.subr.mxu0 0.0
        %870 = vmatpush1.msra.mxu0 0.0
        %871 = vmatprep.subr.mxu0 0.0
        %872 = vmatpush1.msra.mxu0 0.0
        %873 = vmatprep.subr.mxu0 0.0
        %874 = vmatpush1.msra.mxu0 0.0
        %875 = vmatprep.subr.mxu0 0.0
        %876 = vmatpush1.msra.mxu0 0.0
        %877 = vmatprep.subr.mxu0 0.0
        %878 = vmatpush1.msra.mxu0 0.0
        %879 = vmatprep.subr.mxu0 0.0
        %880 = vmatpush1.msra.mxu0 0.0
        %881 = vmatprep.subr.mxu0 0.0
        %882 = vmatpush1.msra.mxu0 0.0
        %883 = vmatprep.subr.mxu0 0.0
        %884 = vmatpush1.msra.mxu0 0.0
        %885 = vmatprep.subr.mxu0 0.0
        %886 = vmatpush1.msra.mxu0 0.0
        %887 = vmatprep.subr.mxu0 0.0
        %888 = vmatpush1.msra.mxu0 0.0
        %889 = vmatprep.subr.mxu0 0.0
        %890 = vmatpush1.msra.mxu0 0.0
        %891 = vmatprep.subr.mxu0 0.0
        %892 = vmatpush1.msra.mxu0 0.0
        %893 = vmatprep.subr.mxu0 0.0
        %894 = vmatpush1.msra.mxu0 0.0
        %895 = vmatprep.subr.mxu0 0.0
        %896 = vmatpush1.msra.mxu0 0.0
        %897 = vmatprep.subr.mxu0 0.0
        %898 = vmatpush1.msra.mxu0 0.0
        %899 = vmatprep.subr.mxu0 0.0
        %900 = vmatpush1.msra.mxu0 0.0
        %901 = vmatprep.subr.mxu0 0.0
        %902 = vmatpush1.msra.mxu0 0.0
        %903 = vmatprep.subr.mxu0 0.0
        %904 = vmatpush1.msra.mxu0 0.0
        %905 = vmatprep.subr.mxu0 0.0
        %906 = vmatpush1.msra.mxu0 0.0
        %907 = vmatprep.subr.mxu0 0.0
        %908 = vmatpush1.msra.mxu0 0.0
        %909 = vmatprep.subr.mxu0 0.0
        %910 = vmatpush1.msra.mxu0 0.0
        %911 = vmatprep.subr.mxu0 0.0
        %912 = vmatpush1.msra.mxu0 0.0
        %913 = vmatprep.subr.mxu0 0.0
        %914 = vmatpush1.msra.mxu0 0.0
        %915 = vmatprep.mubr.f32.mxu0 0.0
        %916 = vmatmul.mubr.f32.gmra.mrb[0].mxu0 %v751
        %v917 = vpop.f32.mrb[0].mxu0
        %v918 = vadd.f32 0.0, %v917
        %v919 = vpop.f32.mrb[0].mxu0
        %v920 = vadd.f32 0.0, %v919
        %921 = vmatprep.mubr.f32.mxu0 0.0
        %922 = vmatmul.mubr.f32.gmra.mrb[0].mxu0 %v754
        %v923 = vpop.f32.mrb[0].mxu0
        %v924 = vadd.f32 0.0, %v923
        %v925 = vpop.f32.mrb[0].mxu0
        %v926 = vadd.f32 0.0, %v925
        %927 = vmatprep.mubr.f32.mxu0 0.0
        %928 = vmatmul.mubr.f32.gmra.mrb[0].mxu0 %v757
        %v929 = vpop.f32.mrb[0].mxu0
        %v930 = vadd.f32 0.0, %v929
        %v931 = vpop.f32.mrb[0].mxu0
        %v932 = vadd.f32 0.0, %v931
        %933 = vmatprep.mubr.f32.mxu0 0.0
        %934 = vmatmul.mubr.f32.gmra.mrb[0].mxu0 %v760
        %v935 = vpop.f32.mrb[0].mxu0
        %v936 = vadd.f32 0.0, %v935
        %v937 = vpop.f32.mrb[0].mxu0
        %v938 = vadd.f32 0.0, %v937
        %939 = vdwg.mxu0
        %v940 = vsel %vm726, 1, 0
        %v941 = vsel %vm727, 1, 0
        %v942 = vsel %vm728, 1, 0
        %v943 = vsel %vm729, 1, 0
        %v944 = vsel %vm730, 1, 0
        %v945 = vsel %vm731, 1, 0
        %v946 = vsel %vm732, 1, 0
        %v947 = vsel %vm733, 1, 0
        %v948 = vsel %vm734, 1, 0
        %v949 = vsel %vm735, 1, 0
        %v950 = vsel %vm736, 1, 0
        %v951 = vsel %vm737, 1, 0
        %v952 = vcvt.s32.f32 %v940
        %v953 = vcvt.s32.f32 %v941
        %v954 = vcvt.s32.f32 %v942
        %v955 = vcvt.s32.f32 %v943
        %v956 = vcvt.s32.f32 %v944
        %v957 = vcvt.s32.f32 %v945
        %v958 = vcvt.s32.f32 %v946
        %v959 = vcvt.s32.f32 %v947
        %v960 = vcvt.s32.f32 %v948
        %v961 = vcvt.s32.f32 %v949
        %v962 = vcvt.s32.f32 %v950
        %v963 = vcvt.s32.f32 %v951
        %964 = vmatprep.subr.mxu0 %v953
        %965 = vmatpush1.msra.mxu0 %v952
        %966 = vmatprep.subr.mxu0 %v957
        %967 = vmatpush1.msra.mxu0 %v956
        %968 = vmatprep.subr.mxu0 %v961
        %969 = vmatpush1.msra.mxu0 %v960
        %970 = vmatprep.subr.mxu0 0.0
        %971 = vmatpush1.msra.mxu0 0.0
        %972 = vmatprep.subr.mxu0 0.0
        %973 = vmatpush1.msra.mxu0 0.0
        %974 = vmatprep.subr.mxu0 0.0
        %975 = vmatpush1.msra.mxu0 0.0
        %976 = vmatprep.subr.mxu0 0.0
        %977 = vmatpush1.msra.mxu0 0.0
        %978 = vmatprep.subr.mxu0 0.0
        %979 = vmatpush1.msra.mxu0 0.0
        %980 = vmatprep.subr.mxu0 0.0
        %981 = vmatpush1.msra.mxu0 0.0
        %982 = vmatprep.subr.mxu0 0.0
        %983 = vmatpush1.msra.mxu0 0.0
        %984 = vmatprep.subr.mxu0 0.0
        %985 = vmatpush1.msra.mxu0 0.0
        %986 = vmatprep.subr.mxu0 0.0
        %987 = vmatpush1.msra.mxu0 0.0
        %988 = vmatprep.subr.mxu0 0.0
        %989 = vmatpush1.msra.mxu0 0.0
        %990 = vmatprep.subr.mxu0 0.0
        %991 = vmatpush1.msra.mxu0 0.0
        %992 = vmatprep.subr.mxu0 0.0
        %993 = vmatpush1.msra.mxu0 0.0
        %994 = vmatprep.subr.mxu0 0.0
        %995 = vmatpush1.msra.mxu0 0.0
        %996 = vmatprep.subr.mxu0 0.0
        %997 = vmatpush1.msra.mxu0 0.0
        %998 = vmatprep.subr.mxu0 0.0
        %999 = vmatpush1.msra.mxu0 0.0
        %1000 = vmatprep.subr.mxu0 0.0
        %1001 = vmatpush1.msra.mxu0 0.0
        %1002 = vmatprep.subr.mxu0 0.0
        %1003 = vmatpush1.msra.mxu0 0.0
        %1004 = vmatprep.subr.mxu0 0.0
        %1005 = vmatpush1.msra.mxu0 0.0
        %1006 = vmatprep.subr.mxu0 0.0
        %1007 = vmatpush1.msra.mxu0 0.0
        %1008 = vmatprep.subr.mxu0 0.0
        %1009 = vmatpush1.msra.mxu0 0.0
        %1010 = vmatprep.subr.mxu0 0.0
        %1011 = vmatpush1.msra.mxu0 0.0
        %1012 = vmatprep.subr.mxu0 0.0
        %1013 = vmatpush1.msra.mxu0 0.0
        %1014 = vmatprep.subr.mxu0 0.0
        %1015 = vmatpush1.msra.mxu0 0.0
        %1016 = vmatprep.subr.mxu0 0.0
        %1017 = vmatpush1.msra.mxu0 0.0
        %1018 = vmatprep.subr.mxu0 0.0
        %1019 = vmatpush1.msra.mxu0 0.0
        %1020 = vmatprep.subr.mxu0 0.0
        %1021 = vmatpush1.msra.mxu0 0.0
        %1022 = vmatprep.subr.mxu0 0.0
        %1023 = vmatpush1.msra.mxu0 0.0
        %1024 = vmatprep.subr.mxu0 0.0
        %1025 = vmatpush1.msra.mxu0 0.0
        %1026 = vmatprep.subr.mxu0 0.0
        %1027 = vmatpush1.msra.mxu0 0.0
        %1028 = vmatprep.mubr.f32.mxu0 0.0
        %1029 = vmatmul.mubr.f32.gmra.mrb[0].mxu0 %v751
        %v1030 = vpop.f32.mrb[0].mxu0
        %v1031 = vadd.f32 0.0, %v1030
        %v1032 = vpop.f32.mrb[0].mxu0
        %v1033 = vadd.f32 0.0, %v1032
        %1034 = vmatprep.mubr.f32.mxu0 0.0
        %1035 = vmatmul.mubr.f32.gmra.mrb[0].mxu0 %v754
        %v1036 = vpop.f32.mrb[0].mxu0
        %v1037 = vadd.f32 0.0, %v1036
        %v1038 = vpop.f32.mrb[0].mxu0
        %v1039 = vadd.f32 0.0, %v1038
        %1040 = vmatprep.mubr.f32.mxu0 0.0
        %1041 = vmatmul.mubr.f32.gmra.mrb[0].mxu0 %v757
        %v1042 = vpop.f32.mrb[0].mxu0
        %v1043 = vadd.f32 0.0, %v1042
        %v1044 = vpop.f32.mrb[0].mxu0
        %v1045 = vadd.f32 0.0, %v1044
        %1046 = vmatprep.mubr.f32.mxu0 0.0
        %1047 = vmatmul.mubr.f32.gmra.mrb[0].mxu0 %v760
        %v1048 = vpop.f32.mrb[0].mxu0
        %v1049 = vadd.f32 0.0, %v1048
        %v1050 = vpop.f32.mrb[0].mxu0
        %v1051 = vadd.f32 0.0, %v1050
        %1052 = vdwg.mxu0
        %1053 = vmatprep.subr.mxu0 %v955
        %1054 = vmatpush1.msra.mxu0 %v954
        %1055 = vmatprep.subr.mxu0 %v959
        %1056 = vmatpush1.msra.mxu0 %v958
        %1057 = vmatprep.subr.mxu0 %v963
        %1058 = vmatpush1.msra.mxu0 %v962
        %1059 = vmatprep.subr.mxu0 0.0
        %1060 = vmatpush1.msra.mxu0 0.0
        %1061 = vmatprep.subr.mxu0 0.0
        %1062 = vmatpush1.msra.mxu0 0.0
        %1063 = vmatprep.subr.mxu0 0.0
        %1064 = vmatpush1.msra.mxu0 0.0
        %1065 = vmatprep.subr.mxu0 0.0
        %1066 = vmatpush1.msra.mxu0 0.0
        %1067 = vmatprep.subr.mxu0 0.0
        %1068 = vmatpush1.msra.mxu0 0.0
        %1069 = vmatprep.subr.mxu0 0.0
        %1070 = vmatpush1.msra.mxu0 0.0
        %1071 = vmatprep.subr.mxu0 0.0
        %1072 = vmatpush1.msra.mxu0 0.0
        %1073 = vmatprep.subr.mxu0 0.0
        %1074 = vmatpush1.msra.mxu0 0.0
        %1075 = vmatprep.subr.mxu0 0.0
        %1076 = vmatpush1.msra.mxu0 0.0
        %1077 = vmatprep.subr.mxu0 0.0
        %1078 = vmatpush1.msra.mxu0 0.0
        %1079 = vmatprep.subr.mxu0 0.0
        %1080 = vmatpush1.msra.mxu0 0.0
        %1081 = vmatprep.subr.mxu0 0.0
        %1082 = vmatpush1.msra.mxu0 0.0
        %1083 = vmatprep.subr.mxu0 0.0
        %1084 = vmatpush1.msra.mxu0 0.0
        %1085 = vmatprep.subr.mxu0 0.0
        %1086 = vmatpush1.msra.mxu0 0.0
        %1087 = vmatprep.subr.mxu0 0.0
        %1088 = vmatpush1.msra.mxu0 0.0
        %1089 = vmatprep.subr.mxu0 0.0
        %1090 = vmatpush1.msra.mxu0 0.0
        %1091 = vmatprep.subr.mxu0 0.0
        %1092 = vmatpush1.msra.mxu0 0.0
        %1093 = vmatprep.subr.mxu0 0.0
        %1094 = vmatpush1.msra.mxu0 0.0
        %1095 = vmatprep.subr.mxu0 0.0
        %1096 = vmatpush1.msra.mxu0 0.0
        %1097 = vmatprep.subr.mxu0 0.0
        %1098 = vmatpush1.msra.mxu0 0.0
        %1099 = vmatprep.subr.mxu0 0.0
        %1100 = vmatpush1.msra.mxu0 0.0
        %1101 = vmatprep.subr.mxu0 0.0
        %1102 = vmatpush1.msra.mxu0 0.0
        %1103 = vmatprep.subr.mxu0 0.0
        %1104 = vmatpush1.msra.mxu0 0.0
        %1105 = vmatprep.subr.mxu0 0.0
        %1106 = vmatpush1.msra.mxu0 0.0
        %1107 = vmatprep.subr.mxu0 0.0
        %1108 = vmatpush1.msra.mxu0 0.0
        %1109 = vmatprep.subr.mxu0 0.0
        %1110 = vmatpush1.msra.mxu0 0.0
        %1111 = vmatprep.subr.mxu0 0.0
        %1112 = vmatpush1.msra.mxu0 0.0
        %1113 = vmatprep.subr.mxu0 0.0
        %1114 = vmatpush1.msra.mxu0 0.0
        %1115 = vmatprep.subr.mxu0 0.0
        %1116 = vmatpush1.msra.mxu0 0.0
        %1117 = vmatprep.mubr.f32.mxu0 0.0
        %1118 = vmatmul.mubr.f32.gmra.mrb[0].mxu0 %v751
        %v1119 = vpop.f32.mrb[0].mxu0
        %v1120 = vadd.f32 0.0, %v1119
        %v1121 = vpop.f32.mrb[0].mxu0
        %v1122 = vadd.f32 0.0, %v1121
        %1123 = vmatprep.mubr.f32.mxu0 0.0
        %1124 = vmatmul.mubr.f32.gmra.mrb[0].mxu0 %v754
        %v1125 = vpop.f32.mrb[0].mxu0
        %v1126 = vadd.f32 0.0, %v1125
        %v1127 = vpop.f32.mrb[0].mxu0
        %v1128 = vadd.f32 0.0, %v1127
        %1129 = vmatprep.mubr.f32.mxu0 0.0
        %1130 = vmatmul.mubr.f32.gmra.mrb[0].mxu0 %v757
        %v1131 = vpop.f32.mrb[0].mxu0
        %v1132 = vadd.f32 0.0, %v1131
        %v1133 = vpop.f32.mrb[0].mxu0
        %v1134 = vadd.f32 0.0, %v1133
        %1135 = vmatprep.mubr.f32.mxu0 0.0
        %1136 = vmatmul.mubr.f32.gmra.mrb[0].mxu0 %v760
        %v1137 = vpop.f32.mrb[0].mxu0
        %v1138 = vadd.f32 0.0, %v1137
        %v1139 = vpop.f32.mrb[0].mxu0
        %v1140 = vadd.f32 0.0, %v1139
        %1141 = vdwg.mxu0
        %vm1142 = vcmp.gt.f32.partialorder %v1031, 0.5
        %vm1143 = vcmp.gt.f32.partialorder %v1033, 0.5
        %vm1144 = vcmp.gt.f32.partialorder %v1120, 0.5
        %vm1145 = vcmp.gt.f32.partialorder %v1122, 0.5
        %vm1146 = vcmp.gt.f32.partialorder %v1037, 0.5
        %vm1147 = vcmp.gt.f32.partialorder %v1039, 0.5
        %vm1148 = vcmp.gt.f32.partialorder %v1126, 0.5
        %vm1149 = vcmp.gt.f32.partialorder %v1128, 0.5
        %vm1150 = vcmp.gt.f32.partialorder %v1043, 0.5
        %vm1151 = vcmp.gt.f32.partialorder %v1045, 0.5
        %vm1152 = vcmp.gt.f32.partialorder %v1132, 0.5
        %vm1153 = vcmp.gt.f32.partialorder %v1134, 0.5
        %vm1154 = vcmp.gt.f32.partialorder %v1049, 0.5
        %vm1155 = vcmp.gt.f32.partialorder %v1051, 0.5
        %vm1156 = vcmp.gt.f32.partialorder %v1138, 0.5
        %vm1157 = vcmp.gt.f32.partialorder %v1140, 0.5
        %v1158 = vadd.f32 %v829, %v841
        %v1159 = vadd.f32 %v831, %v843
        %v1160 = vadd.f32 %v918, %v930
        %v1161 = vadd.f32 %v920, %v932
        %v1162 = vadd.f32 %v835, %v847
        %v1163 = vadd.f32 %v837, %v849
        %v1164 = vadd.f32 %v924, %v936
        %v1165 = vadd.f32 %v926, %v938
        %v1166 = vsub.f32 %v829, %v841
        %v1167 = vsub.f32 %v831, %v843
        %v1168 = vsub.f32 %v918, %v930
        %v1169 = vsub.f32 %v920, %v932
        %v1170 = vsub.f32 %v835, %v847
        %v1171 = vsub.f32 %v837, %v849
        %v1172 = vsub.f32 %v924, %v936
        %v1173 = vsub.f32 %v926, %v938
        %v1174 = vand.u32 2147483647, %v1166
        %v1175 = vand.u32 2147483647, %v1167
        %v1176 = vand.u32 2147483647, %v1168
        %v1177 = vand.u32 2147483647, %v1169
        %v1178 = vand.u32 2147483647, %v1170
        %v1179 = vand.u32 2147483647, %v1171
        %v1180 = vand.u32 2147483647, %v1172
        %v1181 = vand.u32 2147483647, %v1173
        %v1182 = vrcp.pop %v1158
        %v1183 = vrcp.pop %v1159
        %v1184 = vrcp.pop %v1160
        %v1185 = vrcp.pop %v1161
        %v1186 = vrcp.pop %v1162
        %v1187 = vrcp.pop %v1163
        %v1188 = vrcp.pop %v1164
        %v1189 = vrcp.pop %v1165
        %v1190 = vmul.f32 %v1174, %v1182
        %v1191 = vmul.f32 %v1175, %v1183
        %v1192 = vmul.f32 %v1176, %v1184
        %v1193 = vmul.f32 %v1177, %v1185
        %v1194 = vmul.f32 %v1178, %v1186
        %v1195 = vmul.f32 %v1179, %v1187
        %v1196 = vmul.f32 %v1180, %v1188
        %v1197 = vmul.f32 %v1181, %v1189
        %v1198 = vlaneseq
        %v1199 = vshrl.u32 %v1198, 7
        %v1200 = vadd.s32 %v1199, 8
        %vm1201 = vcmp.lt.s32.totalorder %v1199, 10
        %vm1202 = vcmp.lt.s32.totalorder %v1200, 10
        %vm1203 = vmor %vm1142, %vm1150
        %vm1204 = vmor %vm1143, %vm1151
        %vm1205 = vmor %vm1144, %vm1152
        %vm1206 = vmor %vm1145, %vm1153
        %vm1207 = vmor %vm1146, %vm1154
        %vm1208 = vmor %vm1147, %vm1155
        %vm1209 = vmor %vm1148, %vm1156
        %vm1210 = vmor %vm1149, %vm1157
        %vm1211 = vcmp.eq.f32.partialorder %v1158, 0.0
        %vm1212 = vcmp.eq.f32.partialorder %v1159, 0.0
        %vm1213 = vcmp.eq.f32.partialorder %v1160, 0.0
        %vm1214 = vcmp.eq.f32.partialorder %v1161, 0.0
        %vm1215 = vcmp.eq.f32.partialorder %v1162, 0.0
        %vm1216 = vcmp.eq.f32.partialorder %v1163, 0.0
        %vm1217 = vcmp.eq.f32.partialorder %v1164, 0.0
        %vm1218 = vcmp.eq.f32.partialorder %v1165, 0.0
        %vm1219 = vmor %vm1203, %vm1211
        %vm1220 = vmor %vm1204, %vm1212
        %vm1221 = vmor %vm1205, %vm1213
        %vm1222 = vmor %vm1206, %vm1214
        %vm1223 = vmor %vm1207, %vm1215
        %vm1224 = vmor %vm1208, %vm1216
        %vm1225 = vmor %vm1209, %vm1217
        %vm1226 = vmor %vm1210, %vm1218
        %vm1227 = vcmp.ne.f32.partialorder %v1190, %v1190
        %vm1228 = vcmp.ne.f32.partialorder %v1191, %v1191
        %vm1229 = vcmp.ne.f32.partialorder %v1192, %v1192
        %vm1230 = vcmp.ne.f32.partialorder %v1193, %v1193
        %vm1231 = vcmp.ne.f32.partialorder %v1194, %v1194
        %vm1232 = vcmp.ne.f32.partialorder %v1195, %v1195
        %vm1233 = vcmp.ne.f32.partialorder %v1196, %v1196
        %vm1234 = vcmp.ne.f32.partialorder %v1197, %v1197
        %vm1235 = vmor %vm1219, %vm1227
        %vm1236 = vmor %vm1220, %vm1228
        %vm1237 = vmor %vm1221, %vm1229
        %vm1238 = vmor %vm1222, %vm1230
        %vm1239 = vmor %vm1223, %vm1231
        %vm1240 = vmor %vm1224, %vm1232
        %vm1241 = vmor %vm1225, %vm1233
        %vm1242 = vmor %vm1226, %vm1234
        %vm1243 = vmxor %vm1201, 1
        %vm1244 = vmxor %vm1202, 1
        %vm1245 = vmor %vm1235, %vm1243
        %vm1246 = vmor %vm1236, %vm1243
        %vm1247 = vmor %vm1237, %vm1243
        %vm1248 = vmor %vm1238, %vm1243
        %vm1249 = vmor %vm1239, %vm1244
        %vm1250 = vmor %vm1240, %vm1244
        %vm1251 = vmor %vm1241, %vm1244
        %vm1252 = vmor %vm1242, %vm1244
        %v1253 = vsel %vm1245, 1.0, 0.0
        %v1254 = vsel %vm1246, 1.0, 0.0
        %v1255 = vsel %vm1247, 1.0, 0.0
        %v1256 = vsel %vm1248, 1.0, 0.0
        %v1257 = vsel %vm1249, 1.0, 0.0
        %v1258 = vsel %vm1250, 1.0, 0.0
        %v1259 = vsel %vm1251, 1.0, 0.0
        %v1260 = vsel %vm1252, 1.0, 0.0
        %v1261 = vmin.f32 %v1253, %v1257
        %v1262 = vrot.slane %v1261, 4
        %v1263 = vmin.f32 %v1261, %v1262
        %v1264 = vrot.slane %v1263, 2
        %v1265 = vmin.f32 %v1263, %v1264
        %v1266 = vrot.slane %v1265, 1
        %v1267 = vmin.f32 %v1265, %v1266
        %v1268 = vmin.f32 %v1254, %v1258
        %v1269 = vrot.slane %v1268, 4
        %v1270 = vmin.f32 %v1268, %v1269
        %v1271 = vrot.slane %v1270, 2
        %v1272 = vmin.f32 %v1270, %v1271
        %v1273 = vrot.slane %v1272, 1
        %v1274 = vmin.f32 %v1272, %v1273
        %v1275 = vmin.f32 %v1255, %v1259
        %v1276 = vrot.slane %v1275, 4
        %v1277 = vmin.f32 %v1275, %v1276
        %v1278 = vrot.slane %v1277, 2
        %v1279 = vmin.f32 %v1277, %v1278
        %v1280 = vrot.slane %v1279, 1
        %v1281 = vmin.f32 %v1279, %v1280
        %v1282 = vmin.f32 %v1256, %v1260
        %v1283 = vrot.slane %v1282, 4
        %v1284 = vmin.f32 %v1282, %v1283
        %v1285 = vrot.slane %v1284, 2
        %v1286 = vmin.f32 %v1284, %v1285
        %v1287 = vrot.slane %v1286, 1
        %v1288 = vmin.f32 %v1286, %v1287
        %vm1289 = vcmp.gt.f32.partialorder %v1267, 0.0
        %vm1290 = vcmp.gt.f32.partialorder %v1274, 0.0
        %vm1291 = vcmp.gt.f32.partialorder %v1281, 0.0
        %vm1292 = vcmp.gt.f32.partialorder %v1288, 0.0
        %v1293 = vsel %vm1245, inf, %v1190
        %v1294 = vsel %vm1246, inf, %v1191
        %v1295 = vsel %vm1247, inf, %v1192
        %v1296 = vsel %vm1248, inf, %v1193
        %v1297 = vsel %vm1249, inf, %v1194
        %v1298 = vsel %vm1250, inf, %v1195
        %v1299 = vsel %vm1251, inf, %v1196
        %v1300 = vsel %vm1252, inf, %v1197
        %vm1301 = vcmp.eq.s32.totalorder %v1199, 0
        %vm1302 = vcmp.eq.s32.totalorder %v1200, 0
        %v1303 = vsel %vm1289, 1, 0
        %v1304 = vsel %vm1290, 1, 0
        %v1305 = vsel %vm1291, 1, 0
        %v1306 = vsel %vm1292, 1, 0
        %vm1307 = vcmp.eq.s32.totalorder %v1303, 1
        %vm1308 = vcmp.eq.s32.totalorder %v1304, 1
        %vm1309 = vcmp.eq.s32.totalorder %v1305, 1
        %vm1310 = vcmp.eq.s32.totalorder %v1306, 1
        %v1311 = vsel %vm1301, 1, 0
        %v1312 = vsel %vm1302, 1, 0
        %v1313 = vrot.slane %v1311, 1
        %v1314 = vrot.slane %v1311, 2
        %v1315 = vrot.slane %v1311, 3
        %v1316 = vrot.slane %v1311, 4
        %v1317 = vrot.slane %v1311, 5
        %v1318 = vrot.slane %v1311, 6
        %v1319 = vrot.slane %v1311, 7
        %v1320 = vrot.slane %v1312, 1
        %v1321 = vrot.slane %v1312, 2
        %v1322 = vrot.slane %v1312, 3
        %v1323 = vrot.slane %v1312, 4
        %v1324 = vrot.slane %v1312, 5
        %v1325 = vrot.slane %v1312, 6
        %v1326 = vrot.slane %v1312, 7
        %vm1327 = vcmp.ne.s32.totalorder %v1311, 0
        %vm1328 = vcmp.ne.s32.totalorder %v1313, 0
        %vm1329 = vcmp.ne.s32.totalorder %v1314, 0
        %vm1330 = vcmp.ne.s32.totalorder %v1315, 0
        %vm1331 = vcmp.ne.s32.totalorder %v1316, 0
        %vm1332 = vcmp.ne.s32.totalorder %v1317, 0
        %vm1333 = vcmp.ne.s32.totalorder %v1318, 0
        %vm1334 = vcmp.ne.s32.totalorder %v1319, 0
        %vm1335 = vcmp.ne.s32.totalorder %v1312, 0
        %vm1336 = vcmp.ne.s32.totalorder %v1320, 0
        %vm1337 = vcmp.ne.s32.totalorder %v1321, 0
        %vm1338 = vcmp.ne.s32.totalorder %v1322, 0
        %vm1339 = vcmp.ne.s32.totalorder %v1323, 0
        %vm1340 = vcmp.ne.s32.totalorder %v1324, 0
        %vm1341 = vcmp.ne.s32.totalorder %v1325, 0
        %vm1342 = vcmp.ne.s32.totalorder %v1326, 0
        %vm1343 = vmand %vm1307, %vm1327
        %vm1344 = vmand %vm1308, %vm1327
        %vm1345 = vmand %vm1309, %vm1327
        %vm1346 = vmand %vm1310, %vm1327
        %vm1347 = vmand %vm1307, %vm1328
        %vm1348 = vmand %vm1308, %vm1328
        %vm1349 = vmand %vm1309, %vm1328
        %vm1350 = vmand %vm1310, %vm1328
        %vm1351 = vmand %vm1307, %vm1329
        %vm1352 = vmand %vm1308, %vm1329
        %vm1353 = vmand %vm1309, %vm1329
        %vm1354 = vmand %vm1310, %vm1329
        %vm1355 = vmand %vm1307, %vm1330
        %vm1356 = vmand %vm1308, %vm1330
        %vm1357 = vmand %vm1309, %vm1330
        %vm1358 = vmand %vm1310, %vm1330
        %vm1359 = vmand %vm1307, %vm1331
        %vm1360 = vmand %vm1308, %vm1331
        %vm1361 = vmand %vm1309, %vm1331
        %vm1362 = vmand %vm1310, %vm1331
        %vm1363 = vmand %vm1307, %vm1332
        %vm1364 = vmand %vm1308, %vm1332
        %vm1365 = vmand %vm1309, %vm1332
        %vm1366 = vmand %vm1310, %vm1332
        %vm1367 = vmand %vm1307, %vm1333
        %vm1368 = vmand %vm1308, %vm1333
        %vm1369 = vmand %vm1309, %vm1333
        %vm1370 = vmand %vm1310, %vm1333
        %vm1371 = vmand %vm1307, %vm1334
        %vm1372 = vmand %vm1308, %vm1334
        %vm1373 = vmand %vm1309, %vm1334
        %vm1374 = vmand %vm1310, %vm1334
        %vm1375 = vmand %vm1307, %vm1335
        %vm1376 = vmand %vm1308, %vm1335
        %vm1377 = vmand %vm1309, %vm1335
        %vm1378 = vmand %vm1310, %vm1335
        %vm1379 = vmand %vm1307, %vm1336
        %vm1380 = vmand %vm1308, %vm1336
        %vm1381 = vmand %vm1309, %vm1336
        %vm1382 = vmand %vm1310, %vm1336
        %vm1383 = vmand %vm1307, %vm1337
        %vm1384 = vmand %vm1308, %vm1337
        %vm1385 = vmand %vm1309, %vm1337
        %vm1386 = vmand %vm1310, %vm1337
        %vm1387 = vmand %vm1307, %vm1338
        %vm1388 = vmand %vm1308, %vm1338
        %vm1389 = vmand %vm1309, %vm1338
        %vm1390 = vmand %vm1310, %vm1338
        %vm1391 = vmand %vm1307, %vm1339
        %vm1392 = vmand %vm1308, %vm1339
        %vm1393 = vmand %vm1309, %vm1339
        %vm1394 = vmand %vm1310, %vm1339
        %vm1395 = vmand %vm1307, %vm1340
        %vm1396 = vmand %vm1308, %vm1340
        %vm1397 = vmand %vm1309, %vm1340
        %vm1398 = vmand %vm1310, %vm1340
        %vm1399 = vmand %vm1307, %vm1341
        %vm1400 = vmand %vm1308, %vm1341
        %vm1401 = vmand %vm1309, %vm1341
        %vm1402 = vmand %vm1310, %vm1341
        %vm1403 = vmand %vm1307, %vm1342
        %vm1404 = vmand %vm1308, %vm1342
        %vm1405 = vmand %vm1309, %vm1342
        %vm1406 = vmand %vm1310, %vm1342
        %v1415 = vrot.slane %v1293, 1
        %v1416 = vrot.slane %v1294, 1
        %v1417 = vrot.slane %v1295, 1
        %v1418 = vrot.slane %v1296, 1
        %v1419 = vrot.slane %v1293, 2
        %v1420 = vrot.slane %v1294, 2
        %v1421 = vrot.slane %v1295, 2
        %v1422 = vrot.slane %v1296, 2
        %v1423 = vrot.slane %v1293, 3
        %v1424 = vrot.slane %v1294, 3
        %v1425 = vrot.slane %v1295, 3
        %v1426 = vrot.slane %v1296, 3
        %v1427 = vrot.slane %v1293, 4
        %v1428 = vrot.slane %v1294, 4
        %v1429 = vrot.slane %v1295, 4
        %v1430 = vrot.slane %v1296, 4
        %v1431 = vrot.slane %v1293, 5
        %v1432 = vrot.slane %v1294, 5
        %v1433 = vrot.slane %v1295, 5
        %v1434 = vrot.slane %v1296, 5
        %v1435 = vrot.slane %v1293, 6
        %v1436 = vrot.slane %v1294, 6
        %v1437 = vrot.slane %v1295, 6
        %v1438 = vrot.slane %v1296, 6
        %v1439 = vrot.slane %v1293, 7
        %v1440 = vrot.slane %v1294, 7
        %v1441 = vrot.slane %v1295, 7
        %v1442 = vrot.slane %v1296, 7
        %v1443 = vrot.slane %v1297, 1
        %v1444 = vrot.slane %v1298, 1
        %v1445 = vrot.slane %v1299, 1
        %v1446 = vrot.slane %v1300, 1
        %v1447 = vrot.slane %v1297, 2
        %v1448 = vrot.slane %v1298, 2
        %v1449 = vrot.slane %v1299, 2
        %v1450 = vrot.slane %v1300, 2
        %v1451 = vrot.slane %v1297, 3
        %v1452 = vrot.slane %v1298, 3
        %v1453 = vrot.slane %v1299, 3
        %v1454 = vrot.slane %v1300, 3
        %v1455 = vrot.slane %v1297, 4
        %v1456 = vrot.slane %v1298, 4
        %v1457 = vrot.slane %v1299, 4
        %v1458 = vrot.slane %v1300, 4
        %v1459 = vrot.slane %v1297, 5
        %v1460 = vrot.slane %v1298, 5
        %v1461 = vrot.slane %v1299, 5
        %v1462 = vrot.slane %v1300, 5
        %v1463 = vrot.slane %v1297, 6
        %v1464 = vrot.slane %v1298, 6
        %v1465 = vrot.slane %v1299, 6
        %v1466 = vrot.slane %v1300, 6
        %v1467 = vrot.slane %v1297, 7
        %v1468 = vrot.slane %v1298, 7
        %v1469 = vrot.slane %v1299, 7
        %v1470 = vrot.slane %v1300, 7
        %v1535 = vsel %vm1343, 1.0, %v1293
        %v1536 = vsel %vm1344, 1.0, %v1294
        %v1537 = vsel %vm1345, 1.0, %v1295
        %v1538 = vsel %vm1346, 1.0, %v1296
        %v1539 = vsel %vm1347, 1.0, %v1415
        %v1540 = vsel %vm1348, 1.0, %v1416
        %v1541 = vsel %vm1349, 1.0, %v1417
        %v1542 = vsel %vm1350, 1.0, %v1418
        %v1543 = vsel %vm1351, 1.0, %v1419
        %v1544 = vsel %vm1352, 1.0, %v1420
        %v1545 = vsel %vm1353, 1.0, %v1421
        %v1546 = vsel %vm1354, 1.0, %v1422
        %v1547 = vsel %vm1355, 1.0, %v1423
        %v1548 = vsel %vm1356, 1.0, %v1424
        %v1549 = vsel %vm1357, 1.0, %v1425
        %v1550 = vsel %vm1358, 1.0, %v1426
        %v1551 = vsel %vm1359, 1.0, %v1427
        %v1552 = vsel %vm1360, 1.0, %v1428
        %v1553 = vsel %vm1361, 1.0, %v1429
        %v1554 = vsel %vm1362, 1.0, %v1430
        %v1555 = vsel %vm1363, 1.0, %v1431
        %v1556 = vsel %vm1364, 1.0, %v1432
        %v1557 = vsel %vm1365, 1.0, %v1433
        %v1558 = vsel %vm1366, 1.0, %v1434
        %v1559 = vsel %vm1367, 1.0, %v1435
        %v1560 = vsel %vm1368, 1.0, %v1436
        %v1561 = vsel %vm1369, 1.0, %v1437
        %v1562 = vsel %vm1370, 1.0, %v1438
        %v1563 = vsel %vm1371, 1.0, %v1439
        %v1564 = vsel %vm1372, 1.0, %v1440
        %v1565 = vsel %vm1373, 1.0, %v1441
        %v1566 = vsel %vm1374, 1.0, %v1442
        %v1567 = vsel %vm1375, 1.0, %v1297
        %v1568 = vsel %vm1376, 1.0, %v1298
        %v1569 = vsel %vm1377, 1.0, %v1299
        %v1570 = vsel %vm1378, 1.0, %v1300
        %v1571 = vsel %vm1379, 1.0, %v1443
        %v1572 = vsel %vm1380, 1.0, %v1444
        %v1573 = vsel %vm1381, 1.0, %v1445
        %v1574 = vsel %vm1382, 1.0, %v1446
        %v1575 = vsel %vm1383, 1.0, %v1447
        %v1576 = vsel %vm1384, 1.0, %v1448
        %v1577 = vsel %vm1385, 1.0, %v1449
        %v1578 = vsel %vm1386, 1.0, %v1450
        %v1579 = vsel %vm1387, 1.0, %v1451
        %v1580 = vsel %vm1388, 1.0, %v1452
        %v1581 = vsel %vm1389, 1.0, %v1453
        %v1582 = vsel %vm1390, 1.0, %v1454
        %v1583 = vsel %vm1391, 1.0, %v1455
        %v1584 = vsel %vm1392, 1.0, %v1456
        %v1585 = vsel %vm1393, 1.0, %v1457
        %v1586 = vsel %vm1394, 1.0, %v1458
        %v1587 = vsel %vm1395, 1.0, %v1459
        %v1588 = vsel %vm1396, 1.0, %v1460
        %v1589 = vsel %vm1397, 1.0, %v1461
        %v1590 = vsel %vm1398, 1.0, %v1462
        %v1591 = vsel %vm1399, 1.0, %v1463
        %v1592 = vsel %vm1400, 1.0, %v1464
        %v1593 = vsel %vm1401, 1.0, %v1465
        %v1594 = vsel %vm1402, 1.0, %v1466
        %v1595 = vsel %vm1403, 1.0, %v1467
        %v1596 = vsel %vm1404, 1.0, %v1468
        %v1597 = vsel %vm1405, 1.0, %v1469
        %v1598 = vsel %vm1406, 1.0, %v1470
        %vm1599 = vcmask 1040384
        %v1600 = vsel %vm1599, %v1535, inf
        %v1601 = vsel %vm1599, %v1539, inf
        %v1602 = vmin.f32 %v1600, %v1601
        %v1603 = vsel %vm1599, %v1543, inf
        %v1604 = vmin.f32 %v1602, %v1603
        %v1605 = vsel %vm1599, %v1547, inf
        %v1606 = vmin.f32 %v1604, %v1605
        %v1607 = vsel %vm1599, %v1551, inf
        %v1608 = vmin.f32 %v1606, %v1607
        %v1609 = vsel %vm1599, %v1555, inf
        %v1610 = vmin.f32 %v1608, %v1609
        %v1611 = vsel %vm1599, %v1559, inf
        %v1612 = vmin.f32 %v1610, %v1611
        %v1613 = vsel %vm1599, %v1563, inf
        %v1614 = vmin.f32 %v1612, %v1613
        %v1615 = vsel %vm1599, %v1567, inf
        %v1616 = vmin.f32 %v1614, %v1615
        %v1617 = vsel %vm1599, %v1571, inf
        %v1618 = vmin.f32 %v1616, %v1617
        %v1619 = vsel %vm1599, %v1575, inf
        %v1620 = vmin.f32 %v1618, %v1619
        %v1621 = vsel %vm1599, %v1579, inf
        %v1622 = vmin.f32 %v1620, %v1621
        %v1623 = vsel %vm1599, %v1583, inf
        %v1624 = vmin.f32 %v1622, %v1623
        %v1625 = vsel %vm1599, %v1587, inf
        %v1626 = vmin.f32 %v1624, %v1625
        %v1627 = vsel %vm1599, %v1591, inf
        %v1628 = vmin.f32 %v1626, %v1627
        %v1629 = vsel %vm1599, %v1595, inf
        %v1630 = vmin.f32 %v1628, %v1629
        %v1631 = vsel %vm1599, %v1536, inf
        %v1632 = vsel %vm1599, %v1540, inf
        %v1633 = vmin.f32 %v1631, %v1632
        %v1634 = vsel %vm1599, %v1544, inf
        %v1635 = vmin.f32 %v1633, %v1634
        %v1636 = vsel %vm1599, %v1548, inf
        %v1637 = vmin.f32 %v1635, %v1636
        %v1638 = vsel %vm1599, %v1552, inf
        %v1639 = vmin.f32 %v1637, %v1638
        %v1640 = vsel %vm1599, %v1556, inf
        %v1641 = vmin.f32 %v1639, %v1640
        %v1642 = vsel %vm1599, %v1560, inf
        %v1643 = vmin.f32 %v1641, %v1642
        %v1644 = vsel %vm1599, %v1564, inf
        %v1645 = vmin.f32 %v1643, %v1644
        %v1646 = vsel %vm1599, %v1568, inf
        %v1647 = vmin.f32 %v1645, %v1646
        %v1648 = vsel %vm1599, %v1572, inf
        %v1649 = vmin.f32 %v1647, %v1648
        %v1650 = vsel %vm1599, %v1576, inf
        %v1651 = vmin.f32 %v1649, %v1650
        %v1652 = vsel %vm1599, %v1580, inf
        %v1653 = vmin.f32 %v1651, %v1652
        %v1654 = vsel %vm1599, %v1584, inf
        %v1655 = vmin.f32 %v1653, %v1654
        %v1656 = vsel %vm1599, %v1588, inf
        %v1657 = vmin.f32 %v1655, %v1656
        %v1658 = vsel %vm1599, %v1592, inf
        %v1659 = vmin.f32 %v1657, %v1658
        %v1660 = vsel %vm1599, %v1596, inf
        %v1661 = vmin.f32 %v1659, %v1660
        %v1662 = vsel %vm1599, %v1537, inf
        %v1663 = vsel %vm1599, %v1541, inf
        %v1664 = vmin.f32 %v1662, %v1663
        %v1665 = vsel %vm1599, %v1545, inf
        %v1666 = vmin.f32 %v1664, %v1665
        %v1667 = vsel %vm1599, %v1549, inf
        %v1668 = vmin.f32 %v1666, %v1667
        %v1669 = vsel %vm1599, %v1553, inf
        %v1670 = vmin.f32 %v1668, %v1669
        %v1671 = vsel %vm1599, %v1557, inf
        %v1672 = vmin.f32 %v1670, %v1671
        %v1673 = vsel %vm1599, %v1561, inf
        %v1674 = vmin.f32 %v1672, %v1673
        %v1675 = vsel %vm1599, %v1565, inf
        %v1676 = vmin.f32 %v1674, %v1675
        %v1677 = vsel %vm1599, %v1569, inf
        %v1678 = vmin.f32 %v1676, %v1677
        %v1679 = vsel %vm1599, %v1573, inf
        %v1680 = vmin.f32 %v1678, %v1679
        %v1681 = vsel %vm1599, %v1577, inf
        %v1682 = vmin.f32 %v1680, %v1681
        %v1683 = vsel %vm1599, %v1581, inf
        %v1684 = vmin.f32 %v1682, %v1683
        %v1685 = vsel %vm1599, %v1585, inf
        %v1686 = vmin.f32 %v1684, %v1685
        %v1687 = vsel %vm1599, %v1589, inf
        %v1688 = vmin.f32 %v1686, %v1687
        %v1689 = vsel %vm1599, %v1593, inf
        %v1690 = vmin.f32 %v1688, %v1689
        %v1691 = vsel %vm1599, %v1597, inf
        %v1692 = vmin.f32 %v1690, %v1691
        %v1693 = vsel %vm1599, %v1538, inf
        %v1694 = vsel %vm1599, %v1542, inf
        %v1695 = vmin.f32 %v1693, %v1694
        %v1696 = vsel %vm1599, %v1546, inf
        %v1697 = vmin.f32 %v1695, %v1696
        %v1698 = vsel %vm1599, %v1550, inf
        %v1699 = vmin.f32 %v1697, %v1698
        %v1700 = vsel %vm1599, %v1554, inf
        %v1701 = vmin.f32 %v1699, %v1700
        %v1702 = vsel %vm1599, %v1558, inf
        %v1703 = vmin.f32 %v1701, %v1702
        %v1704 = vsel %vm1599, %v1562, inf
        %v1705 = vmin.f32 %v1703, %v1704
        %v1706 = vsel %vm1599, %v1566, inf
        %v1707 = vmin.f32 %v1705, %v1706
        %v1708 = vsel %vm1599, %v1570, inf
        %v1709 = vmin.f32 %v1707, %v1708
        %v1710 = vsel %vm1599, %v1574, inf
        %v1711 = vmin.f32 %v1709, %v1710
        %v1712 = vsel %vm1599, %v1578, inf
        %v1713 = vmin.f32 %v1711, %v1712
        %v1714 = vsel %vm1599, %v1582, inf
        %v1715 = vmin.f32 %v1713, %v1714
        %v1716 = vsel %vm1599, %v1586, inf
        %v1717 = vmin.f32 %v1715, %v1716
        %v1718 = vsel %vm1599, %v1590, inf
        %v1719 = vmin.f32 %v1717, %v1718
        %v1720 = vsel %vm1599, %v1594, inf
        %v1721 = vmin.f32 %v1719, %v1720
        %v1722 = vsel %vm1599, %v1598, inf
        %v1723 = vmin.f32 %v1721, %v1722
        %v1724 = vlaneseq
        %v1725 = vshrl.u32 %v1724, 7
        %v1726 = vsub.s32 0, %v1725
        %v1727 = vrot.slane %v1630, %v1726
        %v1728 = vlaneseq
        %v1729 = vshrl.u32 %v1728, 7
        %v1730 = vsub.s32 0, %v1729
        %v1731 = vrot.slane %v1661, %v1730
        %v1732 = vlaneseq
        %v1733 = vshrl.u32 %v1732, 7
        %v1734 = vsub.s32 0, %v1733
        %v1735 = vrot.slane %v1692, %v1734
        %v1736 = vlaneseq
        %v1737 = vshrl.u32 %v1736, 7
        %v1738 = vsub.s32 0, %v1737
        %v1739 = vrot.slane %v1723, %v1738
        %vm1740 = vcmp.eq.f32.partialorder %v1535, %v1727
        %vm1741 = vcmp.eq.f32.partialorder %v1536, %v1731
        %vm1742 = vcmp.eq.f32.partialorder %v1537, %v1735
        %vm1743 = vcmp.eq.f32.partialorder %v1538, %v1739
        %vm1744 = vcmp.eq.f32.partialorder %v1539, %v1727
        %vm1745 = vcmp.eq.f32.partialorder %v1540, %v1731
        %vm1746 = vcmp.eq.f32.partialorder %v1541, %v1735
        %vm1747 = vcmp.eq.f32.partialorder %v1542, %v1739
        %vm1748 = vcmp.eq.f32.partialorder %v1543, %v1727
        %vm1749 = vcmp.eq.f32.partialorder %v1544, %v1731
        %vm1750 = vcmp.eq.f32.partialorder %v1545, %v1735
        %vm1751 = vcmp.eq.f32.partialorder %v1546, %v1739
        %vm1752 = vcmp.eq.f32.partialorder %v1547, %v1727
        %vm1753 = vcmp.eq.f32.partialorder %v1548, %v1731
        %vm1754 = vcmp.eq.f32.partialorder %v1549, %v1735
        %vm1755 = vcmp.eq.f32.partialorder %v1550, %v1739
        %vm1756 = vcmp.eq.f32.partialorder %v1551, %v1727
        %vm1757 = vcmp.eq.f32.partialorder %v1552, %v1731
        %vm1758 = vcmp.eq.f32.partialorder %v1553, %v1735
        %vm1759 = vcmp.eq.f32.partialorder %v1554, %v1739
        %vm1760 = vcmp.eq.f32.partialorder %v1555, %v1727
        %vm1761 = vcmp.eq.f32.partialorder %v1556, %v1731
        %vm1762 = vcmp.eq.f32.partialorder %v1557, %v1735
        %vm1763 = vcmp.eq.f32.partialorder %v1558, %v1739
        %vm1764 = vcmp.eq.f32.partialorder %v1559, %v1727
        %vm1765 = vcmp.eq.f32.partialorder %v1560, %v1731
        %vm1766 = vcmp.eq.f32.partialorder %v1561, %v1735
        %vm1767 = vcmp.eq.f32.partialorder %v1562, %v1739
        %vm1768 = vcmp.eq.f32.partialorder %v1563, %v1727
        %vm1769 = vcmp.eq.f32.partialorder %v1564, %v1731
        %vm1770 = vcmp.eq.f32.partialorder %v1565, %v1735
        %vm1771 = vcmp.eq.f32.partialorder %v1566, %v1739
        %vm1772 = vcmp.eq.f32.partialorder %v1567, %v1727
        %vm1773 = vcmp.eq.f32.partialorder %v1568, %v1731
        %vm1774 = vcmp.eq.f32.partialorder %v1569, %v1735
        %vm1775 = vcmp.eq.f32.partialorder %v1570, %v1739
        %vm1776 = vcmp.eq.f32.partialorder %v1571, %v1727
        %vm1777 = vcmp.eq.f32.partialorder %v1572, %v1731
        %vm1778 = vcmp.eq.f32.partialorder %v1573, %v1735
        %vm1779 = vcmp.eq.f32.partialorder %v1574, %v1739
        %vm1780 = vcmp.eq.f32.partialorder %v1575, %v1727
        %vm1781 = vcmp.eq.f32.partialorder %v1576, %v1731
        %vm1782 = vcmp.eq.f32.partialorder %v1577, %v1735
        %vm1783 = vcmp.eq.f32.partialorder %v1578, %v1739
        %vm1784 = vcmp.eq.f32.partialorder %v1579, %v1727
        %vm1785 = vcmp.eq.f32.partialorder %v1580, %v1731
        %vm1786 = vcmp.eq.f32.partialorder %v1581, %v1735
        %vm1787 = vcmp.eq.f32.partialorder %v1582, %v1739
        %vm1788 = vcmp.eq.f32.partialorder %v1583, %v1727
        %vm1789 = vcmp.eq.f32.partialorder %v1584, %v1731
        %vm1790 = vcmp.eq.f32.partialorder %v1585, %v1735
        %vm1791 = vcmp.eq.f32.partialorder %v1586, %v1739
        %vm1792 = vcmp.eq.f32.partialorder %v1587, %v1727
        %vm1793 = vcmp.eq.f32.partialorder %v1588, %v1731
        %vm1794 = vcmp.eq.f32.partialorder %v1589, %v1735
        %vm1795 = vcmp.eq.f32.partialorder %v1590, %v1739
        %vm1796 = vcmp.eq.f32.partialorder %v1591, %v1727
        %vm1797 = vcmp.eq.f32.partialorder %v1592, %v1731
        %vm1798 = vcmp.eq.f32.partialorder %v1593, %v1735
        %vm1799 = vcmp.eq.f32.partialorder %v1594, %v1739
        %vm1800 = vcmp.eq.f32.partialorder %v1595, %v1727
        %vm1801 = vcmp.eq.f32.partialorder %v1596, %v1731
        %vm1802 = vcmp.eq.f32.partialorder %v1597, %v1735
        %vm1803 = vcmp.eq.f32.partialorder %v1598, %v1739
        %v1804 = vrot.slane %v1199, 1
        %v1805 = vrot.slane %v1199, 2
        %v1806 = vrot.slane %v1199, 3
        %v1807 = vrot.slane %v1199, 4
        %v1808 = vrot.slane %v1199, 5
        %v1809 = vrot.slane %v1199, 6
        %v1810 = vrot.slane %v1199, 7
        %v1811 = vrot.slane %v1200, 1
        %v1812 = vrot.slane %v1200, 2
        %v1813 = vrot.slane %v1200, 3
        %v1814 = vrot.slane %v1200, 4
        %v1815 = vrot.slane %v1200, 5
        %v1816 = vrot.slane %v1200, 6
        %v1817 = vrot.slane %v1200, 7
        %v1818 = vsel %vm1740, %v1199, 16
        %v1819 = vsel %vm1741, %v1199, 16
        %v1820 = vsel %vm1742, %v1199, 16
        %v1821 = vsel %vm1743, %v1199, 16
        %v1822 = vsel %vm1744, %v1804, 16
        %v1823 = vsel %vm1745, %v1804, 16
        %v1824 = vsel %vm1746, %v1804, 16
        %v1825 = vsel %vm1747, %v1804, 16
        %v1826 = vsel %vm1748, %v1805, 16
        %v1827 = vsel %vm1749, %v1805, 16
        %v1828 = vsel %vm1750, %v1805, 16
        %v1829 = vsel %vm1751, %v1805, 16
        %v1830 = vsel %vm1752, %v1806, 16
        %v1831 = vsel %vm1753, %v1806, 16
        %v1832 = vsel %vm1754, %v1806, 16
        %v1833 = vsel %vm1755, %v1806, 16
        %v1834 = vsel %vm1756, %v1807, 16
        %v1835 = vsel %vm1757, %v1807, 16
        %v1836 = vsel %vm1758, %v1807, 16
        %v1837 = vsel %vm1759, %v1807, 16
        %v1838 = vsel %vm1760, %v1808, 16
        %v1839 = vsel %vm1761, %v1808, 16
        %v1840 = vsel %vm1762, %v1808, 16
        %v1841 = vsel %vm1763, %v1808, 16
        %v1842 = vsel %vm1764, %v1809, 16
        %v1843 = vsel %vm1765, %v1809, 16
        %v1844 = vsel %vm1766, %v1809, 16
        %v1845 = vsel %vm1767, %v1809, 16
        %v1846 = vsel %vm1768, %v1810, 16
        %v1847 = vsel %vm1769, %v1810, 16
        %v1848 = vsel %vm1770, %v1810, 16
        %v1849 = vsel %vm1771, %v1810, 16
        %v1850 = vsel %vm1772, %v1200, 16
        %v1851 = vsel %vm1773, %v1200, 16
        %v1852 = vsel %vm1774, %v1200, 16
        %v1853 = vsel %vm1775, %v1200, 16
        %v1854 = vsel %vm1776, %v1811, 16
        %v1855 = vsel %vm1777, %v1811, 16
        %v1856 = vsel %vm1778, %v1811, 16
        %v1857 = vsel %vm1779, %v1811, 16
        %v1858 = vsel %vm1780, %v1812, 16
        %v1859 = vsel %vm1781, %v1812, 16
        %v1860 = vsel %vm1782, %v1812, 16
        %v1861 = vsel %vm1783, %v1812, 16
        %v1862 = vsel %vm1784, %v1813, 16
        %v1863 = vsel %vm1785, %v1813, 16
        %v1864 = vsel %vm1786, %v1813, 16
        %v1865 = vsel %vm1787, %v1813, 16
        %v1866 = vsel %vm1788, %v1814, 16
        %v1867 = vsel %vm1789, %v1814, 16
        %v1868 = vsel %vm1790, %v1814, 16
        %v1869 = vsel %vm1791, %v1814, 16
        %v1870 = vsel %vm1792, %v1815, 16
        %v1871 = vsel %vm1793, %v1815, 16
        %v1872 = vsel %vm1794, %v1815, 16
        %v1873 = vsel %vm1795, %v1815, 16
        %v1874 = vsel %vm1796, %v1816, 16
        %v1875 = vsel %vm1797, %v1816, 16
        %v1876 = vsel %vm1798, %v1816, 16
        %v1877 = vsel %vm1799, %v1816, 16
        %v1878 = vsel %vm1800, %v1817, 16
        %v1879 = vsel %vm1801, %v1817, 16
        %v1880 = vsel %vm1802, %v1817, 16
        %v1881 = vsel %vm1803, %v1817, 16
        %v1882 = vsel %vm1599, %v1818, 2147483647
        %v1883 = vsel %vm1599, %v1822, 2147483647
        %vm1884 = vcmp.lt.s32.totalorder %v1882, %v1883
        %v1885 = vsel %vm1884, %v1882, %v1883
        %v1886 = vsel %vm1599, %v1826, 2147483647
        %vm1887 = vcmp.lt.s32.totalorder %v1885, %v1886
        %v1888 = vsel %vm1887, %v1885, %v1886
        %v1889 = vsel %vm1599, %v1830, 2147483647
        %vm1890 = vcmp.lt.s32.totalorder %v1888, %v1889
        %v1891 = vsel %vm1890, %v1888, %v1889
        %v1892 = vsel %vm1599, %v1834, 2147483647
        %vm1893 = vcmp.lt.s32.totalorder %v1891, %v1892
        %v1894 = vsel %vm1893, %v1891, %v1892
        %v1895 = vsel %vm1599, %v1838, 2147483647
        %vm1896 = vcmp.lt.s32.totalorder %v1894, %v1895
        %v1897 = vsel %vm1896, %v1894, %v1895
        %v1898 = vsel %vm1599, %v1842, 2147483647
        %vm1899 = vcmp.lt.s32.totalorder %v1897, %v1898
        %v1900 = vsel %vm1899, %v1897, %v1898
        %v1901 = vsel %vm1599, %v1846, 2147483647
        %vm1902 = vcmp.lt.s32.totalorder %v1900, %v1901
        %v1903 = vsel %vm1902, %v1900, %v1901
        %v1904 = vsel %vm1599, %v1850, 2147483647
        %vm1905 = vcmp.lt.s32.totalorder %v1903, %v1904
        %v1906 = vsel %vm1905, %v1903, %v1904
        %v1907 = vsel %vm1599, %v1854, 2147483647
        %vm1908 = vcmp.lt.s32.totalorder %v1906, %v1907
        %v1909 = vsel %vm1908, %v1906, %v1907
        %v1910 = vsel %vm1599, %v1858, 2147483647
        %vm1911 = vcmp.lt.s32.totalorder %v1909, %v1910
        %v1912 = vsel %vm1911, %v1909, %v1910
        %v1913 = vsel %vm1599, %v1862, 2147483647
        %vm1914 = vcmp.lt.s32.totalorder %v1912, %v1913
        %v1915 = vsel %vm1914, %v1912, %v1913
        %v1916 = vsel %vm1599, %v1866, 2147483647
        %vm1917 = vcmp.lt.s32.totalorder %v1915, %v1916
        %v1918 = vsel %vm1917, %v1915, %v1916
        %v1919 = vsel %vm1599, %v1870, 2147483647
        %vm1920 = vcmp.lt.s32.totalorder %v1918, %v1919
        %v1921 = vsel %vm1920, %v1918, %v1919
        %v1922 = vsel %vm1599, %v1874, 2147483647
        %vm1923 = vcmp.lt.s32.totalorder %v1921, %v1922
        %v1924 = vsel %vm1923, %v1921, %v1922
        %v1925 = vsel %vm1599, %v1878, 2147483647
        %vm1926 = vcmp.lt.s32.totalorder %v1924, %v1925
        %v1927 = vsel %vm1926, %v1924, %v1925
        %v1928 = vsel %vm1599, %v1819, 2147483647
        %v1929 = vsel %vm1599, %v1823, 2147483647
        %vm1930 = vcmp.lt.s32.totalorder %v1928, %v1929
        %v1931 = vsel %vm1930, %v1928, %v1929
        %v1932 = vsel %vm1599, %v1827, 2147483647
        %vm1933 = vcmp.lt.s32.totalorder %v1931, %v1932
        %v1934 = vsel %vm1933, %v1931, %v1932
        %v1935 = vsel %vm1599, %v1831, 2147483647
        %vm1936 = vcmp.lt.s32.totalorder %v1934, %v1935
        %v1937 = vsel %vm1936, %v1934, %v1935
        %v1938 = vsel %vm1599, %v1835, 2147483647
        %vm1939 = vcmp.lt.s32.totalorder %v1937, %v1938
        %v1940 = vsel %vm1939, %v1937, %v1938
        %v1941 = vsel %vm1599, %v1839, 2147483647
        %vm1942 = vcmp.lt.s32.totalorder %v1940, %v1941
        %v1943 = vsel %vm1942, %v1940, %v1941
        %v1944 = vsel %vm1599, %v1843, 2147483647
        %vm1945 = vcmp.lt.s32.totalorder %v1943, %v1944
        %v1946 = vsel %vm1945, %v1943, %v1944
        %v1947 = vsel %vm1599, %v1847, 2147483647
        %vm1948 = vcmp.lt.s32.totalorder %v1946, %v1947
        %v1949 = vsel %vm1948, %v1946, %v1947
        %v1950 = vsel %vm1599, %v1851, 2147483647
        %vm1951 = vcmp.lt.s32.totalorder %v1949, %v1950
        %v1952 = vsel %vm1951, %v1949, %v1950
        %v1953 = vsel %vm1599, %v1855, 2147483647
        %vm1954 = vcmp.lt.s32.totalorder %v1952, %v1953
        %v1955 = vsel %vm1954, %v1952, %v1953
        %v1956 = vsel %vm1599, %v1859, 2147483647
        %vm1957 = vcmp.lt.s32.totalorder %v1955, %v1956
        %v1958 = vsel %vm1957, %v1955, %v1956
        %v1959 = vsel %vm1599, %v1863, 2147483647
        %vm1960 = vcmp.lt.s32.totalorder %v1958, %v1959
        %v1961 = vsel %vm1960, %v1958, %v1959
        %v1962 = vsel %vm1599, %v1867, 2147483647
        %vm1963 = vcmp.lt.s32.totalorder %v1961, %v1962
        %v1964 = vsel %vm1963, %v1961, %v1962
        %v1965 = vsel %vm1599, %v1871, 2147483647
        %vm1966 = vcmp.lt.s32.totalorder %v1964, %v1965
        %v1967 = vsel %vm1966, %v1964, %v1965
        %v1968 = vsel %vm1599, %v1875, 2147483647
        %vm1969 = vcmp.lt.s32.totalorder %v1967, %v1968
        %v1970 = vsel %vm1969, %v1967, %v1968
        %v1971 = vsel %vm1599, %v1879, 2147483647
        %vm1972 = vcmp.lt.s32.totalorder %v1970, %v1971
        %v1973 = vsel %vm1972, %v1970, %v1971
        %v1974 = vsel %vm1599, %v1820, 2147483647
        %v1975 = vsel %vm1599, %v1824, 2147483647
        %vm1976 = vcmp.lt.s32.totalorder %v1974, %v1975
        %v1977 = vsel %vm1976, %v1974, %v1975
        %v1978 = vsel %vm1599, %v1828, 2147483647
        %vm1979 = vcmp.lt.s32.totalorder %v1977, %v1978
        %v1980 = vsel %vm1979, %v1977, %v1978
        %v1981 = vsel %vm1599, %v1832, 2147483647
        %vm1982 = vcmp.lt.s32.totalorder %v1980, %v1981
        %v1983 = vsel %vm1982, %v1980, %v1981
        %v1984 = vsel %vm1599, %v1836, 2147483647
        %vm1985 = vcmp.lt.s32.totalorder %v1983, %v1984
        %v1986 = vsel %vm1985, %v1983, %v1984
        %v1987 = vsel %vm1599, %v1840, 2147483647
        %vm1988 = vcmp.lt.s32.totalorder %v1986, %v1987
        %v1989 = vsel %vm1988, %v1986, %v1987
        %v1990 = vsel %vm1599, %v1844, 2147483647
        %vm1991 = vcmp.lt.s32.totalorder %v1989, %v1990
        %v1992 = vsel %vm1991, %v1989, %v1990
        %v1993 = vsel %vm1599, %v1848, 2147483647
        %vm1994 = vcmp.lt.s32.totalorder %v1992, %v1993
        %v1995 = vsel %vm1994, %v1992, %v1993
        %v1996 = vsel %vm1599, %v1852, 2147483647
        %vm1997 = vcmp.lt.s32.totalorder %v1995, %v1996
        %v1998 = vsel %vm1997, %v1995, %v1996
        %v1999 = vsel %vm1599, %v1856, 2147483647
        %vm2000 = vcmp.lt.s32.totalorder %v1998, %v1999
        %v2001 = vsel %vm2000, %v1998, %v1999
        %v2002 = vsel %vm1599, %v1860, 2147483647
        %vm2003 = vcmp.lt.s32.totalorder %v2001, %v2002
        %v2004 = vsel %vm2003, %v2001, %v2002
        %v2005 = vsel %vm1599, %v1864, 2147483647
        %vm2006 = vcmp.lt.s32.totalorder %v2004, %v2005
        %v2007 = vsel %vm2006, %v2004, %v2005
        %v2008 = vsel %vm1599, %v1868, 2147483647
        %vm2009 = vcmp.lt.s32.totalorder %v2007, %v2008
        %v2010 = vsel %vm2009, %v2007, %v2008
        %v2011 = vsel %vm1599, %v1872, 2147483647
        %vm2012 = vcmp.lt.s32.totalorder %v2010, %v2011
        %v2013 = vsel %vm2012, %v2010, %v2011
        %v2014 = vsel %vm1599, %v1876, 2147483647
        %vm2015 = vcmp.lt.s32.totalorder %v2013, %v2014
        %v2016 = vsel %vm2015, %v2013, %v2014
        %v2017 = vsel %vm1599, %v1880, 2147483647
        %vm2018 = vcmp.lt.s32.totalorder %v2016, %v2017
        %v2019 = vsel %vm2018, %v2016, %v2017
        %v2020 = vsel %vm1599, %v1821, 2147483647
        %v2021 = vsel %vm1599, %v1825, 2147483647
        %vm2022 = vcmp.lt.s32.totalorder %v2020, %v2021
        %v2023 = vsel %vm2022, %v2020, %v2021
        %v2024 = vsel %vm1599, %v1829, 2147483647
        %vm2025 = vcmp.lt.s32.totalorder %v2023, %v2024
        %v2026 = vsel %vm2025, %v2023, %v2024
        %v2027 = vsel %vm1599, %v1833, 2147483647
        %vm2028 = vcmp.lt.s32.totalorder %v2026, %v2027
        %v2029 = vsel %vm2028, %v2026, %v2027
        %v2030 = vsel %vm1599, %v1837, 2147483647
        %vm2031 = vcmp.lt.s32.totalorder %v2029, %v2030
        %v2032 = vsel %vm2031, %v2029, %v2030
        %v2033 = vsel %vm1599, %v1841, 2147483647
        %vm2034 = vcmp.lt.s32.totalorder %v2032, %v2033
        %v2035 = vsel %vm2034, %v2032, %v2033
        %v2036 = vsel %vm1599, %v1845, 2147483647
        %vm2037 = vcmp.lt.s32.totalorder %v2035, %v2036
        %v2038 = vsel %vm2037, %v2035, %v2036
        %v2039 = vsel %vm1599, %v1849, 2147483647
        %vm2040 = vcmp.lt.s32.totalorder %v2038, %v2039
        %v2041 = vsel %vm2040, %v2038, %v2039
        %v2042 = vsel %vm1599, %v1853, 2147483647
        %vm2043 = vcmp.lt.s32.totalorder %v2041, %v2042
        %v2044 = vsel %vm2043, %v2041, %v2042
        %v2045 = vsel %vm1599, %v1857, 2147483647
        %vm2046 = vcmp.lt.s32.totalorder %v2044, %v2045
        %v2047 = vsel %vm2046, %v2044, %v2045
        %v2048 = vsel %vm1599, %v1861, 2147483647
        %vm2049 = vcmp.lt.s32.totalorder %v2047, %v2048
        %v2050 = vsel %vm2049, %v2047, %v2048
        %v2051 = vsel %vm1599, %v1865, 2147483647
        %vm2052 = vcmp.lt.s32.totalorder %v2050, %v2051
        %v2053 = vsel %vm2052, %v2050, %v2051
        %v2054 = vsel %vm1599, %v1869, 2147483647
        %vm2055 = vcmp.lt.s32.totalorder %v2053, %v2054
        %v2056 = vsel %vm2055, %v2053, %v2054
        %v2057 = vsel %vm1599, %v1873, 2147483647
        %vm2058 = vcmp.lt.s32.totalorder %v2056, %v2057
        %v2059 = vsel %vm2058, %v2056, %v2057
        %v2060 = vsel %vm1599, %v1877, 2147483647
        %vm2061 = vcmp.lt.s32.totalorder %v2059, %v2060
        %v2062 = vsel %vm2061, %v2059, %v2060
        %v2063 = vsel %vm1599, %v1881, 2147483647
        %vm2064 = vcmp.lt.s32.totalorder %v2062, %v2063
        %v2065 = vsel %vm2064, %v2062, %v2063
        %v2066 = vlaneseq
        %v2067 = vshrl.u32 %v2066, 7
        %v2068 = vsub.s32 0, %v2067
        %v2069 = vrot.slane %v1927, %v2068
        %v2070 = vlaneseq
        %v2071 = vshrl.u32 %v2070, 7
        %v2072 = vsub.s32 0, %v2071
        %v2073 = vrot.slane %v1973, %v2072
        %v2074 = vlaneseq
        %v2075 = vshrl.u32 %v2074, 7
        %v2076 = vsub.s32 0, %v2075
        %v2077 = vrot.slane %v2019, %v2076
        %v2078 = vlaneseq
        %v2079 = vshrl.u32 %v2078, 7
        %v2080 = vsub.s32 0, %v2079
        %v2081 = vrot.slane %v2065, %v2080
        %vm2082 = vcmp.eq.s32.totalorder %v1199, %v2069
        %vm2083 = vcmp.eq.s32.totalorder %v1199, %v2073
        %vm2084 = vcmp.eq.s32.totalorder %v1199, %v2077
        %vm2085 = vcmp.eq.s32.totalorder %v1199, %v2081
        %vm2086 = vcmp.eq.s32.totalorder %v1200, %v2069
        %vm2087 = vcmp.eq.s32.totalorder %v1200, %v2073
        %vm2088 = vcmp.eq.s32.totalorder %v1200, %v2077
        %vm2089 = vcmp.eq.s32.totalorder %v1200, %v2081
        %v2090 = vsel %vm2082, 1, 0
        %v2091 = vsel %vm2083, 1, 0
        %v2092 = vsel %vm2084, 1, 0
        %v2093 = vsel %vm2085, 1, 0
        %v2094 = vsel %vm2086, 1, 0
        %v2095 = vsel %vm2087, 1, 0
        %v2096 = vsel %vm2088, 1, 0
        %v2097 = vsel %vm2089, 1, 0
        %v2098 = vcvt.s32.f32 %v2090
        %v2099 = vcvt.s32.f32 %v2091
        %v2100 = vcvt.s32.f32 %v2092
        %v2101 = vcvt.s32.f32 %v2093
        %v2102 = vcvt.s32.f32 %v2094
        %v2103 = vcvt.s32.f32 %v2095
        %v2104 = vcvt.s32.f32 %v2096
        %v2105 = vcvt.s32.f32 %v2097
        %vm2106 = vcmask 130048
        %v2108 = vsel %vm2106, %v246, 0
        %2110 = vmatprep.subr.mxu0 %v2099
        %2111 = vmatpush1.msra.mxu0 %v2098
        %2112 = vmatprep.subr.mxu0 %v2103
        %2113 = vmatpush1.msra.mxu0 %v2102
        %2114 = vmatprep.subr.mxu0 0.0
        %2115 = vmatpush1.msra.mxu0 0.0
        %2116 = vmatprep.subr.mxu0 0.0
        %2117 = vmatpush1.msra.mxu0 0.0
        %2118 = vmatprep.subr.mxu0 0.0
        %2119 = vmatpush1.msra.mxu0 0.0
        %2120 = vmatprep.subr.mxu0 0.0
        %2121 = vmatpush1.msra.mxu0 0.0
        %2122 = vmatprep.subr.mxu0 0.0
        %2123 = vmatpush1.msra.mxu0 0.0
        %2124 = vmatprep.subr.mxu0 0.0
        %2125 = vmatpush1.msra.mxu0 0.0
        %2126 = vmatprep.subr.mxu0 0.0
        %2127 = vmatpush1.msra.mxu0 0.0
        %2128 = vmatprep.subr.mxu0 0.0
        %2129 = vmatpush1.msra.mxu0 0.0
        %2130 = vmatprep.subr.mxu0 0.0
        %2131 = vmatpush1.msra.mxu0 0.0
        %2132 = vmatprep.subr.mxu0 0.0
        %2133 = vmatpush1.msra.mxu0 0.0
        %2134 = vmatprep.subr.mxu0 0.0
        %2135 = vmatpush1.msra.mxu0 0.0
        %2136 = vmatprep.subr.mxu0 0.0
        %2137 = vmatpush1.msra.mxu0 0.0
        %2138 = vmatprep.subr.mxu0 0.0
        %2139 = vmatpush1.msra.mxu0 0.0
        %2140 = vmatprep.subr.mxu0 0.0
        %2141 = vmatpush1.msra.mxu0 0.0
        %2142 = vmatprep.subr.mxu0 0.0
        %2143 = vmatpush1.msra.mxu0 0.0
        %2144 = vmatprep.subr.mxu0 0.0
        %2145 = vmatpush1.msra.mxu0 0.0
        %2146 = vmatprep.subr.mxu0 0.0
        %2147 = vmatpush1.msra.mxu0 0.0
        %2148 = vmatprep.subr.mxu0 0.0
        %2149 = vmatpush1.msra.mxu0 0.0
        %2150 = vmatprep.subr.mxu0 0.0
        %2151 = vmatpush1.msra.mxu0 0.0
        %2152 = vmatprep.subr.mxu0 0.0
        %2153 = vmatpush1.msra.mxu0 0.0
        %2154 = vmatprep.subr.mxu0 0.0
        %2155 = vmatpush1.msra.mxu0 0.0
        %2156 = vmatprep.subr.mxu0 0.0
        %2157 = vmatpush1.msra.mxu0 0.0
        %2158 = vmatprep.subr.mxu0 0.0
        %2159 = vmatpush1.msra.mxu0 0.0
        %2160 = vmatprep.subr.mxu0 0.0
        %2161 = vmatpush1.msra.mxu0 0.0
        %2162 = vmatprep.subr.mxu0 0.0
        %2163 = vmatpush1.msra.mxu0 0.0
        %2164 = vmatprep.subr.mxu0 0.0
        %2165 = vmatpush1.msra.mxu0 0.0
        %2166 = vmatprep.subr.mxu0 0.0
        %2167 = vmatpush1.msra.mxu0 0.0
        %2168 = vmatprep.subr.mxu0 0.0
        %2169 = vmatpush1.msra.mxu0 0.0
        %2170 = vmatprep.subr.mxu0 0.0
        %2171 = vmatpush1.msra.mxu0 0.0
        %2172 = vmatprep.subr.mxu0 0.0
        %2173 = vmatpush1.msra.mxu0 0.0
        %2174 = vmatprep.mubr.f32.mxu0 0.0
        %2175 = vmatmul.mubr.f32.gmra.mrb[0].mxu0 %v2108
        %v2176 = vpop.f32.mrb[0].mxu0
        %v2177 = vadd.f32 0.0, %v2176
        %v2178 = vpop.f32.mrb[0].mxu0
        %v2179 = vadd.f32 0.0, %v2178
        %2180 = vdwg.mxu0
        %2181 = vmatprep.subr.mxu0 %v2101
        %2182 = vmatpush1.msra.mxu0 %v2100
        %2183 = vmatprep.subr.mxu0 %v2105
        %2184 = vmatpush1.msra.mxu0 %v2104
        %2185 = vmatprep.subr.mxu0 0.0
        %2186 = vmatpush1.msra.mxu0 0.0
        %2187 = vmatprep.subr.mxu0 0.0
        %2188 = vmatpush1.msra.mxu0 0.0
        %2189 = vmatprep.subr.mxu0 0.0
        %2190 = vmatpush1.msra.mxu0 0.0
        %2191 = vmatprep.subr.mxu0 0.0
        %2192 = vmatpush1.msra.mxu0 0.0
        %2193 = vmatprep.subr.mxu0 0.0
        %2194 = vmatpush1.msra.mxu0 0.0
        %2195 = vmatprep.subr.mxu0 0.0
        %2196 = vmatpush1.msra.mxu0 0.0
        %2197 = vmatprep.subr.mxu0 0.0
        %2198 = vmatpush1.msra.mxu0 0.0
        %2199 = vmatprep.subr.mxu0 0.0
        %2200 = vmatpush1.msra.mxu0 0.0
        %2201 = vmatprep.subr.mxu0 0.0
        %2202 = vmatpush1.msra.mxu0 0.0
        %2203 = vmatprep.subr.mxu0 0.0
        %2204 = vmatpush1.msra.mxu0 0.0
        %2205 = vmatprep.subr.mxu0 0.0
        %2206 = vmatpush1.msra.mxu0 0.0
        %2207 = vmatprep.subr.mxu0 0.0
        %2208 = vmatpush1.msra.mxu0 0.0
        %2209 = vmatprep.subr.mxu0 0.0
        %2210 = vmatpush1.msra.mxu0 0.0
        %2211 = vmatprep.subr.mxu0 0.0
        %2212 = vmatpush1.msra.mxu0 0.0
        %2213 = vmatprep.subr.mxu0 0.0
        %2214 = vmatpush1.msra.mxu0 0.0
        %2215 = vmatprep.subr.mxu0 0.0
        %2216 = vmatpush1.msra.mxu0 0.0
        %2217 = vmatprep.subr.mxu0 0.0
        %2218 = vmatpush1.msra.mxu0 0.0
        %2219 = vmatprep.subr.mxu0 0.0
        %2220 = vmatpush1.msra.mxu0 0.0
        %2221 = vmatprep.subr.mxu0 0.0
        %2222 = vmatpush1.msra.mxu0 0.0
        %2223 = vmatprep.subr.mxu0 0.0
        %2224 = vmatpush1.msra.mxu0 0.0
        %2225 = vmatprep.subr.mxu0 0.0
        %2226 = vmatpush1.msra.mxu0 0.0
        %2227 = vmatprep.subr.mxu0 0.0
        %2228 = vmatpush1.msra.mxu0 0.0
        %2229 = vmatprep.subr.mxu0 0.0
        %2230 = vmatpush1.msra.mxu0 0.0
        %2231 = vmatprep.subr.mxu0 0.0
        %2232 = vmatpush1.msra.mxu0 0.0
        %2233 = vmatprep.subr.mxu0 0.0
        %2234 = vmatpush1.msra.mxu0 0.0
        %2235 = vmatprep.subr.mxu0 0.0
        %2236 = vmatpush1.msra.mxu0 0.0
        %2237 = vmatprep.subr.mxu0 0.0
        %2238 = vmatpush1.msra.mxu0 0.0
        %2239 = vmatprep.subr.mxu0 0.0
        %2240 = vmatpush1.msra.mxu0 0.0
        %2241 = vmatprep.subr.mxu0 0.0
        %2242 = vmatpush1.msra.mxu0 0.0
        %2243 = vmatprep.subr.mxu0 0.0
        %2244 = vmatpush1.msra.mxu0 0.0
        %2245 = vmatprep.mubr.f32.mxu0 0.0
        %2246 = vmatmul.mubr.f32.gmra.mrb[0].mxu0 %v2108
        %v2247 = vpop.f32.mrb[0].mxu0
        %v2248 = vadd.f32 0.0, %v2247
        %v2249 = vpop.f32.mrb[0].mxu0
        %v2250 = vadd.f32 0.0, %v2249
        %2251 = vdwg.mxu0
        %v2252 = vsel %vm1142, nan, %v829
        %v2253 = vsel %vm1143, nan, %v831
        %v2254 = vsel %vm1144, nan, %v918
        %v2255 = vsel %vm1145, nan, %v920
        %v2256 = vsel %vm1146, nan, %v835
        %v2257 = vsel %vm1147, nan, %v837
        %v2258 = vsel %vm1148, nan, %v924
        %v2259 = vsel %vm1149, nan, %v926
        %v2260 = vsel %vm1150, nan, %v841
        %v2261 = vsel %vm1151, nan, %v843
        %v2262 = vsel %vm1152, nan, %v930
        %v2263 = vsel %vm1153, nan, %v932
        %v2264 = vsel %vm1154, nan, %v847
        %v2265 = vsel %vm1155, nan, %v849
        %v2266 = vsel %vm1156, nan, %v936
        %v2267 = vsel %vm1157, nan, %v938
        %v2268 = vsel %vm2082, %v2252, 0.0
        %v2269 = vsel %vm2083, %v2253, 0.0
        %v2270 = vsel %vm2084, %v2254, 0.0
        %v2271 = vsel %vm2085, %v2255, 0.0
        %v2272 = vsel %vm2086, %v2256, 0.0
        %v2273 = vsel %vm2087, %v2257, 0.0
        %v2274 = vsel %vm2088, %v2258, 0.0
        %v2275 = vsel %vm2089, %v2259, 0.0
        %v2276 = vadd.f32 %v2268, %v2272
        %v2277 = vrot.slane %v2276, 4
        %v2278 = vadd.f32 %v2276, %v2277
        %v2279 = vrot.slane %v2278, 2
        %v2280 = vadd.f32 %v2278, %v2279
        %v2281 = vrot.slane %v2280, 1
        %v2282 = vadd.f32 %v2280, %v2281
        %v2283 = vadd.f32 %v2269, %v2273
        %v2284 = vrot.slane %v2283, 4
        %v2285 = vadd.f32 %v2283, %v2284
        %v2286 = vrot.slane %v2285, 2
        %v2287 = vadd.f32 %v2285, %v2286
        %v2288 = vrot.slane %v2287, 1
        %v2289 = vadd.f32 %v2287, %v2288
        %v2290 = vadd.f32 %v2270, %v2274
        %v2291 = vrot.slane %v2290, 4
        %v2292 = vadd.f32 %v2290, %v2291
        %v2293 = vrot.slane %v2292, 2
        %v2294 = vadd.f32 %v2292, %v2293
        %v2295 = vrot.slane %v2294, 1
        %v2296 = vadd.f32 %v2294, %v2295
        %v2297 = vadd.f32 %v2271, %v2275
        %v2298 = vrot.slane %v2297, 4
        %v2299 = vadd.f32 %v2297, %v2298
        %v2300 = vrot.slane %v2299, 2
        %v2301 = vadd.f32 %v2299, %v2300
        %v2302 = vrot.slane %v2301, 1
        %v2303 = vadd.f32 %v2301, %v2302
        %v2304 = vsel %vm2082, %v2260, 0.0
        %v2305 = vsel %vm2083, %v2261, 0.0
        %v2306 = vsel %vm2084, %v2262, 0.0
        %v2307 = vsel %vm2085, %v2263, 0.0
        %v2308 = vsel %vm2086, %v2264, 0.0
        %v2309 = vsel %vm2087, %v2265, 0.0
        %v2310 = vsel %vm2088, %v2266, 0.0
        %v2311 = vsel %vm2089, %v2267, 0.0
        %v2312 = vadd.f32 %v2304, %v2308
        %v2313 = vrot.slane %v2312, 4
        %v2314 = vadd.f32 %v2312, %v2313
        %v2315 = vrot.slane %v2314, 2
        %v2316 = vadd.f32 %v2314, %v2315
        %v2317 = vrot.slane %v2316, 1
        %v2318 = vadd.f32 %v2316, %v2317
        %v2319 = vadd.f32 %v2305, %v2309
        %v2320 = vrot.slane %v2319, 4
        %v2321 = vadd.f32 %v2319, %v2320
        %v2322 = vrot.slane %v2321, 2
        %v2323 = vadd.f32 %v2321, %v2322
        %v2324 = vrot.slane %v2323, 1
        %v2325 = vadd.f32 %v2323, %v2324
        %v2326 = vadd.f32 %v2306, %v2310
        %v2327 = vrot.slane %v2326, 4
        %v2328 = vadd.f32 %v2326, %v2327
        %v2329 = vrot.slane %v2328, 2
        %v2330 = vadd.f32 %v2328, %v2329
        %v2331 = vrot.slane %v2330, 1
        %v2332 = vadd.f32 %v2330, %v2331
        %v2333 = vadd.f32 %v2307, %v2311
        %v2334 = vrot.slane %v2333, 4
        %v2335 = vadd.f32 %v2333, %v2334
        %v2336 = vrot.slane %v2335, 2
        %v2337 = vadd.f32 %v2335, %v2336
        %v2338 = vrot.slane %v2337, 1
        %v2339 = vadd.f32 %v2337, %v2338
        %v2404 = vrot.slane %v1539, 7
        %vm2405 = vcmask 1041409
        %v2406 = vsel %vm2405, %v2404, %v1535
        %v2407 = vrot.slane %v1543, 6
        %vm2408 = vcmask 1042434
        %v2409 = vsel %vm2408, %v2407, %v2406
        %v2410 = vrot.slane %v1547, 5
        %vm2411 = vcmask 1043459
        %v2412 = vsel %vm2411, %v2410, %v2409
        %v2413 = vrot.slane %v1551, 4
        %vm2414 = vcmask 1044484
        %v2415 = vsel %vm2414, %v2413, %v2412
        %v2416 = vrot.slane %v1555, 3
        %vm2417 = vcmask 1045509
        %v2418 = vsel %vm2417, %v2416, %v2415
        %v2419 = vrot.slane %v1559, 2
        %vm2420 = vcmask 1046534
        %v2421 = vsel %vm2420, %v2419, %v2418
        %v2422 = vrot.slane %v1563, 1
        %vm2423 = vcmask 1047559
        %v2424 = vsel %vm2423, %v2422, %v2421
        %v2425 = vrot.slane %v1540, 7
        %v2426 = vsel %vm2405, %v2425, %v1536
        %v2427 = vrot.slane %v1544, 6
        %v2428 = vsel %vm2408, %v2427, %v2426
        %v2429 = vrot.slane %v1548, 5
        %v2430 = vsel %vm2411, %v2429, %v2428
        %v2431 = vrot.slane %v1552, 4
        %v2432 = vsel %vm2414, %v2431, %v2430
        %v2433 = vrot.slane %v1556, 3
        %v2434 = vsel %vm2417, %v2433, %v2432
        %v2435 = vrot.slane %v1560, 2
        %v2436 = vsel %vm2420, %v2435, %v2434
        %v2437 = vrot.slane %v1564, 1
        %v2438 = vsel %vm2423, %v2437, %v2436
        %v2439 = vrot.slane %v1541, 7
        %v2440 = vsel %vm2405, %v2439, %v1537
        %v2441 = vrot.slane %v1545, 6
        %v2442 = vsel %vm2408, %v2441, %v2440
        %v2443 = vrot.slane %v1549, 5
        %v2444 = vsel %vm2411, %v2443, %v2442
        %v2445 = vrot.slane %v1553, 4
        %v2446 = vsel %vm2414, %v2445, %v2444
        %v2447 = vrot.slane %v1557, 3
        %v2448 = vsel %vm2417, %v2447, %v2446
        %v2449 = vrot.slane %v1561, 2
        %v2450 = vsel %vm2420, %v2449, %v2448
        %v2451 = vrot.slane %v1565, 1
        %v2452 = vsel %vm2423, %v2451, %v2450
        %v2453 = vrot.slane %v1542, 7
        %v2454 = vsel %vm2405, %v2453, %v1538
        %v2455 = vrot.slane %v1546, 6
        %v2456 = vsel %vm2408, %v2455, %v2454
        %v2457 = vrot.slane %v1550, 5
        %v2458 = vsel %vm2411, %v2457, %v2456
        %v2459 = vrot.slane %v1554, 4
        %v2460 = vsel %vm2414, %v2459, %v2458
        %v2461 = vrot.slane %v1558, 3
        %v2462 = vsel %vm2417, %v2461, %v2460
        %v2463 = vrot.slane %v1562, 2
        %v2464 = vsel %vm2420, %v2463, %v2462
        %v2465 = vrot.slane %v1566, 1
        %v2466 = vsel %vm2423, %v2465, %v2464
        %v2467 = vrot.slane %v1571, 7
        %v2468 = vsel %vm2405, %v2467, %v1567
        %v2469 = vrot.slane %v1575, 6
        %v2470 = vsel %vm2408, %v2469, %v2468
        %v2471 = vrot.slane %v1579, 5
        %v2472 = vsel %vm2411, %v2471, %v2470
        %v2473 = vrot.slane %v1583, 4
        %v2474 = vsel %vm2414, %v2473, %v2472
        %v2475 = vrot.slane %v1587, 3
        %v2476 = vsel %vm2417, %v2475, %v2474
        %v2477 = vrot.slane %v1591, 2
        %v2478 = vsel %vm2420, %v2477, %v2476
        %v2479 = vrot.slane %v1595, 1
        %v2480 = vsel %vm2423, %v2479, %v2478
        %v2481 = vrot.slane %v1572, 7
        %v2482 = vsel %vm2405, %v2481, %v1568
        %v2483 = vrot.slane %v1576, 6
        %v2484 = vsel %vm2408, %v2483, %v2482
        %v2485 = vrot.slane %v1580, 5
        %v2486 = vsel %vm2411, %v2485, %v2484
        %v2487 = vrot.slane %v1584, 4
        %v2488 = vsel %vm2414, %v2487, %v2486
        %v2489 = vrot.slane %v1588, 3
        %v2490 = vsel %vm2417, %v2489, %v2488
        %v2491 = vrot.slane %v1592, 2
        %v2492 = vsel %vm2420, %v2491, %v2490
        %v2493 = vrot.slane %v1596, 1
        %v2494 = vsel %vm2423, %v2493, %v2492
        %v2495 = vrot.slane %v1573, 7
        %v2496 = vsel %vm2405, %v2495, %v1569
        %v2497 = vrot.slane %v1577, 6
        %v2498 = vsel %vm2408, %v2497, %v2496
        %v2499 = vrot.slane %v1581, 5
        %v2500 = vsel %vm2411, %v2499, %v2498
        %v2501 = vrot.slane %v1585, 4
        %v2502 = vsel %vm2414, %v2501, %v2500
        %v2503 = vrot.slane %v1589, 3
        %v2504 = vsel %vm2417, %v2503, %v2502
        %v2505 = vrot.slane %v1593, 2
        %v2506 = vsel %vm2420, %v2505, %v2504
        %v2507 = vrot.slane %v1597, 1
        %v2508 = vsel %vm2423, %v2507, %v2506
        %v2509 = vrot.slane %v1574, 7
        %v2510 = vsel %vm2405, %v2509, %v1570
        %v2511 = vrot.slane %v1578, 6
        %v2512 = vsel %vm2408, %v2511, %v2510
        %v2513 = vrot.slane %v1582, 5
        %v2514 = vsel %vm2411, %v2513, %v2512
        %v2515 = vrot.slane %v1586, 4
        %v2516 = vsel %vm2414, %v2515, %v2514
        %v2517 = vrot.slane %v1590, 3
        %v2518 = vsel %vm2417, %v2517, %v2516
        %v2519 = vrot.slane %v1594, 2
        %v2520 = vsel %vm2420, %v2519, %v2518
        %v2521 = vrot.slane %v1598, 1
        %v2522 = vsel %vm2423, %v2521, %v2520
        %v2531 = vsel %vm2082, %v2424, 0.0
        %v2532 = vsel %vm2083, %v2438, 0.0
        %v2533 = vsel %vm2084, %v2452, 0.0
        %v2534 = vsel %vm2085, %v2466, 0.0
        %v2535 = vsel %vm2086, %v2480, 0.0
        %v2536 = vsel %vm2087, %v2494, 0.0
        %v2537 = vsel %vm2088, %v2508, 0.0
        %v2538 = vsel %vm2089, %v2522, 0.0
        %v2539 = vadd.f32 %v2531, %v2535
        %v2540 = vrot.slane %v2539, 4
        %v2541 = vadd.f32 %v2539, %v2540
        %v2542 = vrot.slane %v2541, 2
        %v2543 = vadd.f32 %v2541, %v2542
        %v2544 = vrot.slane %v2543, 1
        %v2545 = vadd.f32 %v2543, %v2544
        %v2546 = vadd.f32 %v2532, %v2536
        %v2547 = vrot.slane %v2546, 4
        %v2548 = vadd.f32 %v2546, %v2547
        %v2549 = vrot.slane %v2548, 2
        %v2550 = vadd.f32 %v2548, %v2549
        %v2551 = vrot.slane %v2550, 1
        %v2552 = vadd.f32 %v2550, %v2551
        %v2553 = vadd.f32 %v2533, %v2537
        %v2554 = vrot.slane %v2553, 4
        %v2555 = vadd.f32 %v2553, %v2554
        %v2556 = vrot.slane %v2555, 2
        %v2557 = vadd.f32 %v2555, %v2556
        %v2558 = vrot.slane %v2557, 1
        %v2559 = vadd.f32 %v2557, %v2558
        %v2560 = vadd.f32 %v2534, %v2538
        %v2561 = vrot.slane %v2560, 4
        %v2562 = vadd.f32 %v2560, %v2561
        %v2563 = vrot.slane %v2562, 2
        %v2564 = vadd.f32 %v2562, %v2563
        %v2565 = vrot.slane %v2564, 1
        %v2566 = vadd.f32 %v2564, %v2565
        %vm2567 = vcmask 1045504
        %v2568 = vsel %vm2567, %v2177, %v2282
        %v2569 = vsel %vm2567, %v2179, %v2289
        %v2570 = vsel %vm2567, %v2248, %v2296
        %v2571 = vsel %vm2567, %v2250, %v2303
        %vm2572 = vcmask 1046528
        %v2573 = vsel %vm2572, %v2568, %v2318
        %v2574 = vsel %vm2572, %v2569, %v2325
        %v2575 = vsel %vm2572, %v2570, %v2332
        %v2576 = vsel %vm2572, %v2571, %v2339
        %2577 = vst [vmem:[%s215] sm:$0xff] %v2573
        %2578 = vst [vmem:[%s215 + $0x8] sm:$0xff] %v2574
        %2579 = vst [vmem:[%s215 + $0x10] sm:$0xff] %v2575
        %2580 = vst [vmem:[%s215 + $0x18] sm:$0xff] %v2576
        %2581 = vst [vmem:[%s215 + $0x20] sm:$0x1] %v2545
        %2582 = vst [vmem:[%s215 + $0x28] sm:$0x1] %v2552
        %2583 = vst [vmem:[%s215 + $0x30] sm:$0x1] %v2559
        %2584 = vst [vmem:[%s215 + $0x38] sm:$0x1] %v2566
        %s2585 = sand.u32 %s118, 1
        %s2586 = scalar_lea.sflag [#allocation4], %s2585
        %s2587 = sand.u32 %s118, 1
        %s2588 = smul.addr %s2587, 64
        %s2589 = scalar_lea.vmem [#allocation5], %s2588
        // Predicated region
        $region41: #{tpu_custom_call.1} parent=35 // pred_check
          %p2590 = pneg %p128
        $region42: #{tpu_custom_call.1} parent=35 // pred_check_branch
          %2592 = sbr.rel (%p2590) target = $region44
        $region43: #{tpu_custom_call.1} parent=35 // pred_region
          %s2593 = smul.u32 4, %s21
          %s2595 = ssub.s32 1024, 1024
          %2596 = vsyncadd %s2586, %s2595
          %s2597 = smul.addr %s2593, 128
          %s2598 = scalar_lea.hbm %s4, %s2597
          %s2599 = sshll.u32 %s2589, 4
          %s2600 = int_to_ptr.vmem [resolvable:$true] %s2599
          %2605 = dma.vmem_to_hbm [thread:$0]  %s2600, 1024, %s2598, %s2586, 512, 1024, 32
        $region44: #{tpu_custom_call.1} parent=35 // pred_fallthru
          _
      $region36: #{tpu_custom_call.1} parent=5 // pred_fallthru
        _
      %p2606 = scmp.le.s32.totalorder 2, %s16
      // Predicated region
      $region45: #{tpu_custom_call.1} parent=5 // pred_check
        %p2607 = pneg %p2606
      $region46: #{tpu_custom_call.1} parent=5 // pred_check_branch
        %2609 = sbr.rel (%p2607) target = $region48
      $region47: #{tpu_custom_call.1} parent=5 // pred_region
        %s2610 = ssub.s32 %s16, 2
        // Predicated region
        $region49: #{tpu_custom_call.1} parent=47 // pred_check
          %p2611 = pneg %p134
        $region50: #{tpu_custom_call.1} parent=47 // pred_check_branch
          %2613 = sbr.rel (%p2611) target = $region52
        $region51: #{tpu_custom_call.1} parent=47 // pred_region
          %s2614 = sand.u32 %s119, 1
          %s2615 = scalar_lea.sflag [#allocation4], %s2614
          %s2616 = sand.u32 %s119, 1
          %s2617 = smul.addr %s2616, 64
          %s2618 = scalar_lea.vmem [#allocation5], %s2617
          %2619 = dma.done %s2615, 1024
        $region52: #{tpu_custom_call.1} parent=47 // pred_fallthru
          _
      $region48: #{tpu_custom_call.1} parent=5 // pred_fallthru
        _
    $region6: #{tpu_custom_call.1} parent=1 // loop_footer
      %s20 = sadd.s32 1, %s16
    $region7: #{tpu_custom_call.1} parent=1 // loop_footer_branch
      %15 = sbr.rel target = $region3
    $region8: #{tpu_custom_call.1} parent=1 // loop_exit
      _
    %2620 = vsyncpa [#allocation3], 1
    %s2621 = scalar_lea.sflag [#allocation3], 1
    %2622 = vsyncpa %s2621, 1
    %2623 = vsyncpa [#allocation4], 1
    %s2624 = scalar_lea.sflag [#allocation4], 1
    %2625 = vsyncpa %s2624, 1

</llo_original>
